<compile_context>
chip_gen: v7x
topology: tpu7x:2x2x1
jax: 0.10.0
libtpu: 0.0.40
codegen_flags: <defaults>
</compile_context>

<pallas_src>
import functools

import jax
import jax.numpy as jnp
from jax import lax
from jax.experimental import pallas as pl
from jax.experimental.pallas import tpu as pltpu

LANE = 128


def _round_up(x, m):
    return ((x + m - 1) // m) * m


# ---------------------------------------------------------------------------
# Pallas kernel: fused LayerNorm + tag head + per-tile masked-CE partials.
# ---------------------------------------------------------------------------
def _fused_head_loss_kernel(x_ref, w_ref, b_ref, tgt_ref,
                            logits_ref, partial_ref,
                            *, num_tag, n_rows, block_rows):
    i = pl.program_id(0)

    # ---- fused LayerNorm over H (affine folded into W'/b'), single-pass var
    x = x_ref[...].astype(jnp.float32)                              # (TM, H)
    mu = jnp.mean(x, axis=-1, keepdims=True)
    ex2 = jnp.mean(x * x, axis=-1, keepdims=True)
    var = jnp.maximum(ex2 - mu * mu, 0.0)
    xhat = (x - mu) * lax.rsqrt(var + 1e-12)

    # ---- tag head: bf16 MXU matmul, f32 accumulate, 128-lane padded cols ---
    logits = jnp.dot(xhat.astype(jnp.bfloat16), w_ref[...],
                     preferred_element_type=jnp.float32) + b_ref[...]  # (TM, TP)

    tm, tp = logits.shape
    col = lax.broadcasted_iota(jnp.int32, (tm, tp), 1)
    valid_col = col < num_tag

    # Store only the real T columns (masked vst in VMEM; 16x less HBM writeback).
    logits_ref[...] = logits[:, :num_tag]

    # ---- per-token CE: logsumexp - logits[target]  (exp/log on EUP) --------
    masked_logits = jnp.where(valid_col, logits, jnp.float32(-1e30))
    m = jnp.max(masked_logits, axis=-1, keepdims=True)
    lse = m + jnp.log(jnp.sum(jnp.exp(masked_logits - m), axis=-1, keepdims=True))
    tgt = tgt_ref[...]                                              # (TM, 1) i32
    onehot = (col == tgt) & valid_col
    picked = jnp.sum(jnp.where(onehot, logits, 0.0), axis=-1, keepdims=True)
    per_tok = lse - picked                                          # (TM, 1)

    # ---- masked partial reduction (ignore == num_tag, ragged-tile guard) ---
    row = lax.broadcasted_iota(jnp.int32, (tm, 1), 0) + i * block_rows
    active = (tgt < num_tag) & (row < n_rows)
    psum = jnp.sum(jnp.where(active, per_tok, 0.0))
    pcnt = jnp.sum(active.astype(jnp.float32))

    lane = lax.broadcasted_iota(jnp.int32, (1, tp), 1)
    partial_ref[0] = jnp.where(lane == 0, psum,
                               jnp.where(lane == 1, pcnt, jnp.float32(0.0)))


def tag_head_and_loss(x_flat, ln_g, ln_b, w, b, mask_flat, tgt_flat,
                      *, block_rows=2048):
    """x_flat: (N, H) pre-LayerNorm hidden states.  Returns (logits (N,T), loss)."""
    n, h = x_flat.shape
    t = w.shape[1]
    tp = _round_up(max(t, LANE), LANE)                 # lane-padded tag dim

    tm = min(_round_up(block_rows, 8), _round_up(n, 8))
    grid_m = pl.cdiv(n, tm)

    # Fold LN affine into the head: W' = diag(g) @ W, b' = b + beta @ W
    # (algebraically identical to LayerNorm-affine followed by Linear).
    w_fold = ln_g.astype(jnp.float32)[:, None] * w.astype(jnp.float32)
    b_fold = b.astype(jnp.float32) + ln_b.astype(jnp.float32) @ w.astype(jnp.float32)
    w_pad = jnp.zeros((h, tp), jnp.float32).at[:, :t].set(w_fold).astype(jnp.bfloat16)
    b_pad = jnp.zeros((1, tp), jnp.float32).at[:, :t].set(b_fold.reshape(1, t))

    # Merge the attention mask into the target stream: ignore index == num_tag.
    tgt_enc = jnp.where(mask_flat == 1, tgt_flat, t).astype(jnp.int32)

    kernel = functools.partial(_fused_head_loss_kernel,
                               num_tag=t, n_rows=n, block_rows=tm)

    cost = pl.CostEstimate(
        flops=2 * n * h * tp,
        transcendentals=n * tp + 2 * n,
        bytes_accessed=n * h * 2 + h * tp * 2 + tp * 4
                       + n * 4 + n * t * 4 + grid_m * tp * 4,
    )

    logits, partials = pl.pallas_call(
        kernel,
        out_shape=(jax.ShapeDtypeStruct((n, t), jnp.float32),
                   jax.ShapeDtypeStruct((grid_m, 1, tp), jnp.float32)),
        grid=(grid_m,),
        in_specs=[
            pl.BlockSpec((tm, h), lambda i: (i, 0)),    # x tile (bf16, pipelined)
            pl.BlockSpec((h, tp), lambda i: (0, 0)),    # W' (bf16, lane-padded)
            pl.BlockSpec((1, tp), lambda i: (0, 0)),    # b' (f32, lane-padded)
            pl.BlockSpec((tm, 1), lambda i: (i, 0)),    # encoded targets
        ],
        out_specs=(
            pl.BlockSpec((tm, t), lambda i: (i, 0)),        # logits (N, T) f32
            pl.BlockSpec((1, 1, tp), lambda i: (i, 0, 0)),  # per-tile (sum,count)
        ),
        compiler_params=pltpu.CompilerParams(
            # Per-tile loss partials -> fully parallel row axis (shards across
            # v7x's 2 TensorCores; harmless no-op on single-TC v5e/v6e).
            dimension_semantics=("parallel",),
            vmem_limit_bytes=32 * 1024 * 1024,
        ),
        cost_estimate=cost,
    )(x_flat.astype(jnp.bfloat16), w_pad, b_pad, tgt_enc)

    loss_sum = jnp.sum(partials[:, 0, 0])
    loss_cnt = jnp.sum(partials[:, 0, 1])
    loss = loss_sum / jnp.maximum(loss_cnt, 1.0)   # guard: no active tokens
    return logits, loss


# ---------------------------------------------------------------------------
# EntityModel forward (JAX glue + Pallas hot path)
# ---------------------------------------------------------------------------
def make_params(key, vocab=64, type_vocab=2, max_pos=64, hidden=128, num_tag=8):
    ks = jax.random.split(key, 7)
    return {
        "word_emb": jax.random.normal(ks[0], (vocab, hidden), jnp.float32) * 0.02,
        "pos_emb":  jax.random.normal(ks[1], (max_pos, hidden), jnp.float32) * 0.02,
        "type_emb": jax.random.normal(ks[2], (type_vocab, hidden), jnp.float32) * 0.02,
        "ln_g":     1.0 + 0.1 * jax.random.normal(ks[3], (hidden,), jnp.float32),
        "ln_b":     0.05 * jax.random.normal(ks[4], (hidden,), jnp.float32),
        # nn.Linear(768 -> num_tag) equivalent (hidden -> num_tag here)
        "out_w":    jax.random.normal(ks[5], (hidden, num_tag), jnp.float32) * 0.02,
        "out_b":    jax.random.normal(ks[6], (num_tag,), jnp.float32) * 0.02,
    }


def entity_model_forward(params, lens, ids, mask, token_type_ids, target_tag,
                         *, block_rows=2048):
    B, S = ids.shape
    H = params["word_emb"].shape[1]
    T = params["out_w"].shape[1]

    # --- BERT stand-in (glue, plain JAX): embedding sum (pre-LayerNorm) ----
    we = jnp.take(params["word_emb"], ids, axis=0)                 # (B, S, H)
    te = jnp.take(params["type_emb"], token_type_ids, axis=0)      # (B, S, H)
    pe = params["pos_emb"][:S][None, :, :]                         # (1, S, H)
    x = we + te + pe                                               # (B, S, H)

    # --- Dropout(0.3) in eval mode: identity --------------------------------
    # --- Pallas hot path: fused LayerNorm + tag head + masked cross entropy -
    x_flat = x.reshape(B * S, H)
    mask_flat = mask.reshape(B * S, 1)
    tgt_flat = target_tag.reshape(B * S, 1)

    logits_flat, loss = tag_head_and_loss(
        x_flat, params["ln_g"], params["ln_b"],
        params["out_w"], params["out_b"],
        mask_flat, tgt_flat, block_rows=block_rows)

    pred_tag = logits_flat.reshape(B, S, T)
    return (lens, ids, pred_tag, target_tag, loss)


# ---------------------------------------------------------------------------
# Reference (plain jnp, mirrors kernel numerics) for correctness check
# ---------------------------------------------------------------------------
def _reference(params, ids, mask, token_type_ids, target_tag):
    B, S = ids.shape
    H = params["word_emb"].shape[1]
    we = jnp.take(params["word_emb"], ids, axis=0)
    te = jnp.take(params["type_emb"], token_type_ids, axis=0)
    pe = params["pos_emb"][:S][None, :, :]
    x = (we + te + pe).astype(jnp.bfloat16).astype(jnp.float32)   # bf16 feed
    mu = jnp.mean(x, axis=-1, keepdims=True)
    var = jnp.maximum(jnp.mean(x * x, axis=-1, keepdims=True) - mu * mu, 0.0)
    xhat = (x - mu) * lax.rsqrt(var + 1e-12)
    # LN affine folded into the head (same algebra as LN -> Linear).
    w_fold = params["ln_g"][:, None] * params["out_w"]
    b_fold = params["out_b"] + params["ln_b"] @ params["out_w"]
    logits = jnp.dot(xhat.reshape(B * S, H).astype(jnp.bfloat16),
                     w_fold.astype(jnp.bfloat16),
                     preferred_element_type=jnp.float32) + b_fold[None, :]
    lse = jax.scipy.special.logsumexp(logits, axis=-1)
    picked = jnp.take_along_axis(logits, target_tag.reshape(-1, 1), axis=-1)[:, 0]
    per_tok = lse - picked
    active = mask.reshape(-1) == 1
    loss = jnp.sum(jnp.where(active, per_tok, 0.0)) / jnp.maximum(
        jnp.sum(active.astype(jnp.float32)), 1.0)
    return logits, loss


if __name__ == "__main__":
    B, S, H, T = 4, 48, 128, 8
    VOCAB, MAXPOS = 64, 64

    params = make_params(jax.random.PRNGKey(0), vocab=VOCAB, type_vocab=2,
                         max_pos=MAXPOS, hidden=H, num_tag=T)

    k1, k2, k3 = jax.random.split(jax.random.PRNGKey(0), 3)
    ids = jax.random.randint(k1, (B, S), 0, VOCAB, dtype=jnp.int32)
    token_type_ids = jnp.zeros((B, S), dtype=jnp.int32)
    lens = jnp.array([40, 17, 48, 5], dtype=jnp.int32)
    pos = jnp.arange(S)[None, :]
    mask = (pos < lens[:, None]).astype(jnp.int32)                  # (B, S)
    target_tag = jax.random.randint(k3, (B, S), 0, T, dtype=jnp.int32)

    # block_rows=128 -> grid of 2 row tiles (second one ragged) at these test
    # shapes; production default is 2048 on all generations (v5e/v6e/v7x).
    out = entity_model_forward(params, lens, ids, mask, token_type_ids,
                               target_tag, block_rows=128)
    out = jax.block_until_ready(out)
    _, _, pred_tag, _, loss = out

    ref_logits, ref_loss = _reference(params, ids, mask, token_type_ids, target_tag)

    assert jnp.allclose(pred_tag.reshape(B * S, T), ref_logits, atol=5e-3, rtol=5e-3)
    assert jnp.allclose(loss, ref_loss, atol=5e-3, rtol=5e-3)
    assert bool(jnp.isfinite(loss))

    print("KERNEL_OK")
</pallas_src>

<mosaic_0001>
module attributes {stable_mosaic.version = 11 : i64} {
  func.func @_fused_head_loss_kernel(%arg0: i32, %arg1: memref<128x128xbf16, #tpu.memory_space<vmem>>, %arg2: memref<128x128xbf16, #tpu.memory_space<vmem>>, %arg3: memref<1x128xf32, #tpu.memory_space<vmem>>, %arg4: memref<128x1xi32, #tpu.memory_space<vmem>>, %arg5: memref<128x8xf32, #tpu.memory_space<vmem>>, %arg6: memref<1x1x128xf32, #tpu.memory_space<vmem>>) attributes {dimension_semantics = [#tpu.dimension_semantics<parallel>], iteration_bounds = array<i64: 2>, scalar_prefetch = 0 : i64, scratch_operands = 0 : i64, tpu.core_type = #tpu.core_type<tc>, window_params = [{transform_indices = @transform_0, window_bounds = array<i64: 128, 128>}, {pipeline_mode = #tpu.pipeline_mode<synchronous>, transform_indices = @transform_1, window_bounds = array<i64: 128, 128>}, {pipeline_mode = #tpu.pipeline_mode<synchronous>, transform_indices = @transform_2, window_bounds = array<i64: 1, 128>}, {transform_indices = @transform_3, window_bounds = array<i64: 128, 1>}, {transform_indices = @transform_4, window_bounds = array<i64: 128, 8>}, {transform_indices = @transform_5, window_bounds = array<i64: 1, 1, 128>}]} {
    %c0 = arith.constant 0 : index
    %c0_0 = arith.constant 0 : index
    %0 = vector.load %arg1[%c0, %c0_0] : memref<128x128xbf16, #tpu.memory_space<vmem>>, vector<128x128xbf16>
    %1 = arith.extf %0 : vector<128x128xbf16> to vector<128x128xf32>
    %cst = arith.constant dense<0.000000e+00> : vector<128xf32>
    %2 = vector.multi_reduction <add>, %1, %cst [1] : vector<128x128xf32> to vector<128xf32>
    %3 = vector.shape_cast %2 : vector<128xf32> to vector<128x1xf32>
    %cst_1 = arith.constant 1.280000e+02 : f32
    %4 = vector.broadcast %cst_1 : f32 to vector<128x1xf32>
    %5 = arith.divf %3, %4 : vector<128x1xf32>
    %6 = arith.mulf %1, %1 : vector<128x128xf32>
    %cst_2 = arith.constant dense<0.000000e+00> : vector<128xf32>
    %7 = vector.multi_reduction <add>, %6, %cst_2 [1] : vector<128x128xf32> to vector<128xf32>
    %8 = vector.shape_cast %7 : vector<128xf32> to vector<128x1xf32>
    %cst_3 = arith.constant 1.280000e+02 : f32
    %9 = vector.broadcast %cst_3 : f32 to vector<128x1xf32>
    %10 = arith.divf %8, %9 : vector<128x1xf32>
    %11 = arith.mulf %5, %5 : vector<128x1xf32>
    %12 = arith.subf %10, %11 : vector<128x1xf32>
    %cst_4 = arith.constant 0.000000e+00 : f32
    %13 = vector.broadcast %cst_4 : f32 to vector<128x1xf32>
    %14 = arith.maximumf %12, %13 : vector<128x1xf32>
    %15 = vector.broadcast %5 : vector<128x1xf32> to vector<128x128xf32>
    %16 = arith.subf %1, %15 : vector<128x128xf32>
    %cst_5 = arith.constant 9.99999996E-13 : f32
    %17 = vector.broadcast %cst_5 : f32 to vector<128x1xf32>
    %18 = arith.addf %14, %17 : vector<128x1xf32>
    %19 = math.rsqrt %18 : vector<128x1xf32>
    %20 = vector.broadcast %19 : vector<128x1xf32> to vector<128x128xf32>
    %21 = arith.mulf %16, %20 : vector<128x128xf32>
    %22 = arith.truncf %21 : vector<128x128xf32> to vector<128x128xbf16>
    %c0_6 = arith.constant 0 : index
    %c0_7 = arith.constant 0 : index
    %23 = vector.load %arg2[%c0_6, %c0_7] : memref<128x128xbf16, #tpu.memory_space<vmem>>, vector<128x128xbf16>
    %cst_8 = arith.constant dense<0.000000e+00> : vector<128x128xf32>
    %24 = tpu.matmul %22, %23, %cst_8 {dimension_numbers = #tpu.dot_dimension_numbers<[1], [0], [0], [1], [0, 0, 1, 1], [], []>} : vector<128x128xbf16>, vector<128x128xbf16>, vector<128x128xf32> -> vector<128x128xf32>
    %c0_9 = arith.constant 0 : index
    %c0_10 = arith.constant 0 : index
    %25 = vector.load %arg3[%c0_9, %c0_10] : memref<1x128xf32, #tpu.memory_space<vmem>>, vector<1x128xf32>
    %26 = vector.broadcast %25 : vector<1x128xf32> to vector<128x128xf32>
    %27 = arith.addf %24, %26 : vector<128x128xf32>
    %28 = tpu.iota {dimensions = array<i32: 1>} : vector<128x128xi32>
    %c8_i32 = arith.constant 8 : i32
    %29 = vector.broadcast %c8_i32 : i32 to vector<128x128xi32>
    %30 = arith.cmpi slt, %28, %29 : vector<128x128xi32>
    %31 = vector.extract_strided_slice %27 {offsets = [0, 0], sizes = [128, 8], strides = [1, 1]} : vector<128x128xf32> to vector<128x8xf32>
    %c0_11 = arith.constant 0 : index
    %c0_12 = arith.constant 0 : index
    %32 = vector.load %arg5[%c0_11, %c0_12] : memref<128x8xf32, #tpu.memory_space<vmem>>, vector<128x8xf32>
    tpu.vector_store %arg5[%c0_11, %c0_12], %31 {strides = array<i32>} : memref<128x8xf32, #tpu.memory_space<vmem>>, vector<128x8xf32>,
    %cst_13 = arith.constant -1.000000e+30 : f32
    %33 = vector.broadcast %cst_13 : f32 to vector<128x128xf32>
    %34 = arith.select %30, %27, %33 : vector<128x128xi1>, vector<128x128xf32>
    %cst_14 = arith.constant dense<0xFF800000> : vector<128xf32>
    %35 = vector.multi_reduction <maximumf>, %34, %cst_14 [1] : vector<128x128xf32> to vector<128xf32>
    %36 = vector.shape_cast %35 : vector<128xf32> to vector<128x1xf32>
    %37 = vector.broadcast %36 : vector<128x1xf32> to vector<128x128xf32>
    %38 = arith.subf %34, %37 : vector<128x128xf32>
    %39 = math.exp %38 : vector<128x128xf32>
    %cst_15 = arith.constant dense<0.000000e+00> : vector<128xf32>
    %40 = vector.multi_reduction <add>, %39, %cst_15 [1] : vector<128x128xf32> to vector<128xf32>
    %41 = vector.shape_cast %40 : vector<128xf32> to vector<128x1xf32>
    %42 = math.log %41 : vector<128x1xf32>
    %43 = arith.addf %36, %42 : vector<128x1xf32>
    %c0_16 = arith.constant 0 : index
    %c0_17 = arith.constant 0 : index
    %44 = vector.load %arg4[%c0_16, %c0_17] : memref<128x1xi32, #tpu.memory_space<vmem>>, vector<128x1xi32>
    %45 = vector.broadcast %44 : vector<128x1xi32> to vector<128x128xi32>
    %46 = arith.cmpi eq, %28, %45 : vector<128x128xi32>
    %47 = arith.andi %46, %30 : vector<128x128xi1>
    %cst_18 = arith.constant 0.000000e+00 : f32
    %48 = vector.broadcast %cst_18 : f32 to vector<128x128xf32>
    %49 = arith.select %47, %27, %48 : vector<128x128xi1>, vector<128x128xf32>
    %cst_19 = arith.constant dense<0.000000e+00> : vector<128xf32>
    %50 = vector.multi_reduction <add>, %49, %cst_19 [1] : vector<128x128xf32> to vector<128xf32>
    %51 = vector.shape_cast %50 : vector<128xf32> to vector<128x1xf32>
    %52 = arith.subf %43, %51 : vector<128x1xf32>
    %53 = tpu.iota {dimensions = array<i32: 0>} : vector<128x1xi32>
    %c128_i32 = arith.constant 128 : i32
    %54 = arith.muli %arg0, %c128_i32 : i32
    %55 = vector.broadcast %54 : i32 to vector<128x1xi32>
    %56 = arith.addi %53, %55 : vector<128x1xi32>
    %c8_i32_20 = arith.constant 8 : i32
    %57 = vector.broadcast %c8_i32_20 : i32 to vector<128x1xi32>
    %58 = arith.cmpi slt, %44, %57 : vector<128x1xi32>
    %c192_i32 = arith.constant 192 : i32
    %59 = vector.broadcast %c192_i32 : i32 to vector<128x1xi32>
    %60 = arith.cmpi slt, %56, %59 : vector<128x1xi32>
    %61 = arith.andi %58, %60 : vector<128x1xi1>
    %cst_21 = arith.constant 0.000000e+00 : f32
    %62 = vector.broadcast %cst_21 : f32 to vector<128x1xf32>
    %63 = arith.select %61, %52, %62 : vector<128x1xi1>, vector<128x1xf32>
    %64 = vector.shape_cast %63 : vector<128x1xf32> to vector<1x128x1xf32>
    %cst_22 = arith.constant dense<0.000000e+00> : vector<1xf32>
    %65 = vector.multi_reduction <add>, %64, %cst_22 [1, 2] : vector<1x128x1xf32> to vector<1xf32>
    %66 = vector.shape_cast %65 : vector<1xf32> to vector<1x1x1xf32>
    %67 = vector.extract %66[0, 0, 0] : f32 from vector<1x1x1xf32>
    %68 = arith.extui %61 : vector<128x1xi1> to vector<128x1xi32>
    %69 = arith.sitofp %68 : vector<128x1xi32> to vector<128x1xf32>
    %70 = vector.shape_cast %69 : vector<128x1xf32> to vector<1x128x1xf32>
    %cst_23 = arith.constant dense<0.000000e+00> : vector<1xf32>
    %71 = vector.multi_reduction <add>, %70, %cst_23 [1, 2] : vector<1x128x1xf32> to vector<1xf32>
    %72 = vector.shape_cast %71 : vector<1xf32> to vector<1x1x1xf32>
    %73 = vector.extract %72[0, 0, 0] : f32 from vector<1x1x1xf32>
    %74 = tpu.iota {dimensions = array<i32: 1>} : vector<1x128xi32>
    %c0_i32 = arith.constant 0 : i32
    %75 = vector.broadcast %c0_i32 : i32 to vector<1x128xi32>
    %76 = arith.cmpi eq, %74, %75 : vector<1x128xi32>
    %c1_i32 = arith.constant 1 : i32
    %77 = vector.broadcast %c1_i32 : i32 to vector<1x128xi32>
    %78 = arith.cmpi eq, %74, %77 : vector<1x128xi32>
    %cst_24 = arith.constant 0.000000e+00 : f32
    %79 = vector.broadcast %73 : f32 to vector<1x128xf32>
    %80 = vector.broadcast %cst_24 : f32 to vector<1x128xf32>
    %81 = arith.select %78, %79, %80 : vector<1x128xi1>, vector<1x128xf32>
    %82 = vector.broadcast %67 : f32 to vector<1x128xf32>
    %83 = arith.select %76, %82, %81 : vector<1x128xi1>, vector<1x128xf32>
    %c0_25 = arith.constant 0 : index
    %c0_26 = arith.constant 0 : index
    %c0_27 = arith.constant 0 : index
    %84 = vector.load %arg6[%c0_25, %c0_26, %c0_27] : memref<1x1x128xf32, #tpu.memory_space<vmem>>, vector<1x1x128xf32>
    %85 = vector.shape_cast %84 : vector<1x1x128xf32> to vector<1x128xf32>
    %86 = vector.shape_cast %83 : vector<1x128xf32> to vector<1x1x128xf32>
    tpu.vector_store %arg6[%c0_25, %c0_26, %c0_27], %86 {strides = array<i32>} : memref<1x1x128xf32, #tpu.memory_space<vmem>>, vector<1x1x128xf32>,
    return
  }
  func.func @transform_0(%arg0: i32) -> (i32, i32) {
    %c0_i32 = arith.constant 0 : i32
    %c0_i32_0 = arith.constant 0 : i32
    return %arg0, %c0_i32 : i32, i32
  }
  func.func @transform_1(%arg0: i32) -> (i32, i32) {
    %c0_i32 = arith.constant 0 : i32
    %c0_i32_0 = arith.constant 0 : i32
    %c0_i32_1 = arith.constant 0 : i32
    return %c0_i32, %c0_i32_0 : i32, i32
  }
  func.func @transform_2(%arg0: i32) -> (i32, i32) {
    %c0_i32 = arith.constant 0 : i32
    %c0_i32_0 = arith.constant 0 : i32
    %c0_i32_1 = arith.constant 0 : i32
    return %c0_i32, %c0_i32_0 : i32, i32
  }
  func.func @transform_3(%arg0: i32) -> (i32, i32) {
    %c0_i32 = arith.constant 0 : i32
    %c0_i32_0 = arith.constant 0 : i32
    return %arg0, %c0_i32 : i32, i32
  }
  func.func @transform_4(%arg0: i32) -> (i32, i32) {
    %c0_i32 = arith.constant 0 : i32
    %c0_i32_0 = arith.constant 0 : i32
    return %arg0, %c0_i32 : i32, i32
  }
  func.func @transform_5(%arg0: i32) -> (i32, i32, i32) {
    %c0_i32 = arith.constant 0 : i32
    %c0_i32_0 = arith.constant 0 : i32
    %c0_i32_1 = arith.constant 0 : i32
    return %arg0, %c0_i32, %c0_i32_0 : i32, i32, i32
  }
}

</mosaic_0001>

<llo_original>
// kernel: tpu_custom_call.1
$region0: #{tpu_custom_call.1}
  #allocation0 [shape = 'u32[]', space=smem, size = 0x4, offset = 0x4, fixed_abs, tag = 'smem constant byte address 0x4 - core index']
  #allocation1 [shape = 'u32[144,128]{1,0:T(1,128)}', space=vmem, size = 0x12000, scoped, tag = 'internal scratch']
  %s0 = inlined_call_operand.vmem [shape: bf16[192,128], index: 0, kind: input, shape index: {}]
  %s1 = inlined_call_operand.vmem [shape: bf16[128,128], index: 1, kind: input, shape index: {}]
  %s2 = inlined_call_operand.vmem [shape: f32[1,128], index: 2, kind: input, shape index: {}]
  %s3 = inlined_call_operand.vmem [shape: s32[192,1], index: 3, kind: input, shape index: {}]
  %s4 = inlined_call_operand.vmem [shape: f32[192,8], index: 4, kind: output, shape index: {0}]
  %s5 = inlined_call_operand.hbm [shape: f32[2,1,128], index: 5, kind: output, shape index: {1}]
  %6 = xla_tuple %s4, %s5
  %s7 = sld [smem:[#allocation0]]
  $region105: #{tpu_custom_call.1} parent=0
    _
  %s9 = ssub.s32 1, %s7
  %s10 = scalar_select 0, %s9, %s7
  $region1: #{tpu_custom_call.1} parent=0
    #allocation2 [shape = 'u8[131072]{0}', space=vmem, size = 0x20000, scoped, tag = 'output window, operand 0']
    #allocation3 [shape = 'u8[1024]{0}', space=vmem, size = 0x400, scoped, tag = 'output window, operand 1']
    #allocation4 [shape = 's32[2]{0}', space=sflag, size = 0x8, scoped, tag = 'scoped memory for tpu_custom_call.1']
    %11 = vsyncpa [#allocation4], 0
    %s12 = scalar_lea.sflag [#allocation4], 1
    %13 = vsyncpa %s12, 0
    loop: start=0, step=1, limit=4
    $region2: #{tpu_custom_call.1} parent=1 // loop_pre_header
      _
    $region3: #{tpu_custom_call.1} parent=1 // loop_header
      %s15 = sphi 0, %s19
      %p16 = scmp.ge.s32.totalorder %s15, 4
      %s25 = sphi 0, %s27
      %s28 = sphi 0, %s25
      %s29 = sphi 0, %s28
      %s45 = sphi 0, %s29
      %s49 = sphi 0, %s49
      %s51 = sphi 0, %s49
      %s52 = sphi 0, %s51
      %s66 = sphi 0, %s52
      %s70 = sphi 0, %s70
      %s72 = sphi 0, %s70
      %s73 = sphi 0, %s72
      %s87 = sphi 0, %s73
      %s93 = sphi 0, %s95
      %s96 = sphi 0, %s93
      %s97 = sphi 0, %s96
      %s113 = sphi 0, %s97
      %s119 = sphi 0, %s121
      %s122 = sphi 0, %s119
      %s123 = sphi 0, %s122
      %s139 = sphi 0, %s123
      %s145 = sphi 0, %s147
      %s148 = sphi 0, %s145
      %s149 = sphi 0, %s148
      %s165 = sphi 0, %s149
    $region4: #{tpu_custom_call.1} parent=1 // loop_header_branch
      %18 = sbr.rel (%p16) target = $region8
    $region5: #{tpu_custom_call.1} parent=1 // loop_body
      %s20 = ssub.s32 %s15, 1
      %s21 = ssub.s32 %s15, 2
      %s22 = sadd.s32 %s15, 1
      %s23 = ssub.s32 %s15, %s22
      %p24 = scmp.eq.s32.totalorder %s23, 0
      %s26 = sadd.s32 %s25, 1
      %s27 = scalar_select %p24, %s25, %s26
      %p30 = pneg %p24
      %p31 = scmp.eq.s32.totalorder %s15, 1
      %p32 = por %p30, %p31
      %p33 = scmp.ne.s32.totalorder %s25, %s28
      %p34 = scmp.eq.s32.totalorder %s15, 0
      %p35 = por %p33, %p34
      %p36 = scmp.ne.s32.totalorder %s25, %s28
      %p37 = scmp.eq.s32.totalorder %s20, 1
      %p38 = por %p36, %p37
      %p39 = scmp.ne.s32.totalorder %s28, %s29
      %p40 = scmp.eq.s32.totalorder %s20, 0
      %p41 = por %p39, %p40
      %p42 = scmp.ne.s32.totalorder %s28, %s29
      %p43 = scmp.eq.s32.totalorder %s21, 1
      %p44 = por %p42, %p43
      %p46 = scmp.ne.s32.totalorder %s29, %s45
      %p47 = scmp.eq.s32.totalorder %s21, 0
      %p48 = por %p46, %p47
      %s50 = sadd.s32 %s49, 1
      %p53 = scmp.eq.s32.totalorder %s15, 1
      %p54 = scmp.ne.s32.totalorder %s49, %s51
      %p55 = scmp.eq.s32.totalorder %s15, 0
      %p56 = por %p54, %p55
      %p57 = scmp.ne.s32.totalorder %s49, %s51
      %p58 = scmp.eq.s32.totalorder %s20, 1
      %p59 = por %p57, %p58
      %p60 = scmp.ne.s32.totalorder %s51, %s52
      %p61 = scmp.eq.s32.totalorder %s20, 0
      %p62 = por %p60, %p61
      %p63 = scmp.ne.s32.totalorder %s51, %s52
      %p64 = scmp.eq.s32.totalorder %s21, 1
      %p65 = por %p63, %p64
      %p67 = scmp.ne.s32.totalorder %s52, %s66
      %p68 = scmp.eq.s32.totalorder %s21, 0
      %p69 = por %p67, %p68
      %s71 = sadd.s32 %s70, 1
      %p74 = scmp.eq.s32.totalorder %s15, 1
      %p75 = scmp.ne.s32.totalorder %s70, %s72
      %p76 = scmp.eq.s32.totalorder %s15, 0
      %p77 = por %p75, %p76
      %p78 = scmp.ne.s32.totalorder %s70, %s72
      %p79 = scmp.eq.s32.totalorder %s20, 1
      %p80 = por %p78, %p79
      %p81 = scmp.ne.s32.totalorder %s72, %s73
      %p82 = scmp.eq.s32.totalorder %s20, 0
      %p83 = por %p81, %p82
      %p84 = scmp.ne.s32.totalorder %s72, %s73
      %p85 = scmp.eq.s32.totalorder %s21, 1
      %p86 = por %p84, %p85
      %p88 = scmp.ne.s32.totalorder %s73, %s87
      %p89 = scmp.eq.s32.totalorder %s21, 0
      %p90 = por %p88, %p89
      %s91 = ssub.s32 %s15, %s22
      %p92 = scmp.eq.s32.totalorder %s91, 0
      %s94 = sadd.s32 %s93, 1
      %s95 = scalar_select %p92, %s93, %s94
      %p98 = pneg %p92
      %p99 = scmp.eq.s32.totalorder %s15, 1
      %p100 = por %p98, %p99
      %p101 = scmp.ne.s32.totalorder %s93, %s96
      %p102 = scmp.eq.s32.totalorder %s15, 0
      %p103 = por %p101, %p102
      %p104 = scmp.ne.s32.totalorder %s93, %s96
      %p105 = scmp.eq.s32.totalorder %s20, 1
      %p106 = por %p104, %p105
      %p107 = scmp.ne.s32.totalorder %s96, %s97
      %p108 = scmp.eq.s32.totalorder %s20, 0
      %p109 = por %p107, %p108
      %p110 = scmp.ne.s32.totalorder %s96, %s97
      %p111 = scmp.eq.s32.totalorder %s21, 1
      %p112 = por %p110, %p111
      %p114 = scmp.ne.s32.totalorder %s97, %s113
      %p115 = scmp.eq.s32.totalorder %s21, 0
      %p116 = por %p114, %p115
      %s117 = ssub.s32 %s15, %s22
      %p118 = scmp.eq.s32.totalorder %s117, 0
      %s120 = sadd.s32 %s119, 1
      %s121 = scalar_select %p118, %s119, %s120
      %p124 = pneg %p118
      %p125 = scmp.eq.s32.totalorder %s15, 1
      %p126 = por %p124, %p125
      %p127 = scmp.ne.s32.totalorder %s119, %s122
      %p128 = scmp.eq.s32.totalorder %s15, 0
      %p129 = por %p127, %p128
      %p130 = scmp.ne.s32.totalorder %s119, %s122
      %p131 = scmp.eq.s32.totalorder %s20, 1
      %p132 = por %p130, %p131
      %p133 = scmp.ne.s32.totalorder %s122, %s123
      %p134 = scmp.eq.s32.totalorder %s20, 0
      %p135 = por %p133, %p134
      %p136 = scmp.ne.s32.totalorder %s122, %s123
      %p137 = scmp.eq.s32.totalorder %s21, 1
      %p138 = por %p136, %p137
      %p140 = scmp.ne.s32.totalorder %s123, %s139
      %p141 = scmp.eq.s32.totalorder %s21, 0
      %p142 = por %p140, %p141
      %s143 = ssub.s32 %s15, %s22
      %p144 = scmp.eq.s32.totalorder %s143, 0
      %s146 = sadd.s32 %s145, 1
      %s147 = scalar_select %p144, %s145, %s146
      %p150 = pneg %p144
      %p151 = scmp.eq.s32.totalorder %s15, 1
      %p152 = por %p150, %p151
      %p153 = scmp.ne.s32.totalorder %s145, %s148
      %p154 = scmp.eq.s32.totalorder %s15, 0
      %p155 = por %p153, %p154
      %p156 = scmp.ne.s32.totalorder %s145, %s148
      %p157 = scmp.eq.s32.totalorder %s20, 1
      %p158 = por %p156, %p157
      %p159 = scmp.ne.s32.totalorder %s148, %s149
      %p160 = scmp.eq.s32.totalorder %s20, 0
      %p161 = por %p159, %p160
      %p162 = scmp.ne.s32.totalorder %s148, %s149
      %p163 = scmp.eq.s32.totalorder %s21, 1
      %p164 = por %p162, %p163
      %p166 = scmp.ne.s32.totalorder %s149, %s165
      %p167 = scmp.eq.s32.totalorder %s21, 0
      %p168 = por %p166, %p167
      %p169 = scmp.le.s32.totalorder 1, %s15
      %p170 = scmp.lt.s32.totalorder %s15, 3
      %p171 = pnand %p169, %p170
      %p172 = pneg %p171
      // Predicated region
      $region9: #{tpu_custom_call.1} parent=5 // pred_check
        _
      $region10: #{tpu_custom_call.1} parent=5 // pred_check_branch
        %174 = sbr.rel (%p171) target = $region12
      $region11: #{tpu_custom_call.1} parent=5 // pred_region
        %s175 = ssub.s32 %s15, 1
        // Predicated region
        $region13: #{tpu_custom_call.1} parent=11 // pred_check
          %p176 = pneg %p62
        $region14: #{tpu_custom_call.1} parent=11 // pred_check_branch
          %178 = sbr.rel (%p176) target = $region16
        $region15: #{tpu_custom_call.1} parent=11 // pred_region
          _
        $region16: #{tpu_custom_call.1} parent=11 // pred_fallthru
          _
        // Predicated region
        $region17: #{tpu_custom_call.1} parent=11 // pred_check
          %p179 = pneg %p83
        $region18: #{tpu_custom_call.1} parent=11 // pred_check_branch
          %181 = sbr.rel (%p179) target = $region20
        $region19: #{tpu_custom_call.1} parent=11 // pred_region
          _
        $region20: #{tpu_custom_call.1} parent=11 // pred_fallthru
          _
      $region12: #{tpu_custom_call.1} parent=5 // pred_fallthru
        _
      %p182 = scmp.lt.s32.totalorder %s15, 2
      // Predicated region
      $region21: #{tpu_custom_call.1} parent=5 // pred_check
        %p183 = pneg %p182
      $region22: #{tpu_custom_call.1} parent=5 // pred_check_branch
        %185 = sbr.rel (%p183) target = $region24
      $region23: #{tpu_custom_call.1} parent=5 // pred_region
        // Predicated region
        $region25: #{tpu_custom_call.1} parent=23 // pred_check
          %p186 = pneg %p35
        $region26: #{tpu_custom_call.1} parent=23 // pred_check_branch
          %188 = sbr.rel (%p186) target = $region28
        $region27: #{tpu_custom_call.1} parent=23 // pred_region
          %s189 = smul.u32 16, %s15
          %s190 = ssub.s32 24, %s189
          %p191 = scmp.lt.s32.totalorder %s190, 16
          %s192 = scalar_select %p191, %s190, 16
          %s193 = smul.u32 64, %s192
          %p194 = scmp.lt.s32.totalorder %s189, 23
          %s195 = scalar_select %p194, %s189, 23
          %s196 = smul.addr %s195, 4
          %s197 = scalar_lea.vmem %s0, %s196
          %s198 = smul.u32 16, %s15
          %s199 = ssub.s32 24, %s198
          %p200 = scmp.lt.s32.totalorder %s199, 16
          %s201 = scalar_select %p200, %s199, 16
          %s202 = smul.u32 64, %s201
        $region28: #{tpu_custom_call.1} parent=23 // pred_fallthru
          _
        // Predicated region
        $region29: #{tpu_custom_call.1} parent=23 // pred_check
          %p203 = pneg %p103
        $region30: #{tpu_custom_call.1} parent=23 // pred_check_branch
          %205 = sbr.rel (%p203) target = $region32
        $region31: #{tpu_custom_call.1} parent=23 // pred_region
          %s206 = smul.u32 16, %s15
          %s207 = ssub.s32 24, %s206
          %p208 = scmp.lt.s32.totalorder %s207, 16
          %s209 = scalar_select %p208, %s207, 16
          %s210 = smul.u32 128, %s209
          %p211 = scmp.lt.s32.totalorder %s206, 23
          %s212 = scalar_select %p211, %s206, 23
          %s213 = smul.addr %s212, 8
          %s214 = scalar_lea.vmem %s3, %s213
          %s215 = smul.u32 16, %s15
          %s216 = ssub.s32 24, %s215
          %p217 = scmp.lt.s32.totalorder %s216, 16
          %s218 = scalar_select %p217, %s216, 16
          %s219 = smul.u32 128, %s218
        $region32: #{tpu_custom_call.1} parent=23 // pred_fallthru
          _
      $region24: #{tpu_custom_call.1} parent=5 // pred_fallthru
        _
      %p220 = scmp.le.s32.totalorder 1, %s15
      %p221 = scmp.lt.s32.totalorder %s15, 3
      %p222 = pnand %p220, %p221
      %p223 = pneg %p222
      // Predicated region
      $region33: #{tpu_custom_call.1} parent=5 // pred_check
        _
      $region34: #{tpu_custom_call.1} parent=5 // pred_check_branch
        %225 = sbr.rel (%p222) target = $region36
      $region35: #{tpu_custom_call.1} parent=5 // pred_region
        %s226 = ssub.s32 %s15, 1
        %s227 = smul.u32 16, %s20
        %s228 = ssub.s32 24, %s227
        %p229 = scmp.lt.s32.totalorder %s228, 16
        %s230 = scalar_select %p229, %s228, 16
        %s231 = smul.u32 64, %s230
        %p232 = scmp.lt.s32.totalorder %s227, 23
        %s233 = scalar_select %p232, %s227, 23
        %s234 = smul.addr %s233, 4
        %s235 = scalar_lea.vmem %s0, %s234
        %p236 = pneg %p41
        %p237 = pneg %p38
        %p238 = pneg %p62
        %p239 = pneg %p59
        %p240 = pneg %p83
        %p241 = pneg %p80
        %s242 = smul.u32 16, %s20
        %s243 = ssub.s32 24, %s242
        %p244 = scmp.lt.s32.totalorder %s243, 16
        %s245 = scalar_select %p244, %s243, 16
        %s246 = smul.u32 128, %s245
        %p247 = scmp.lt.s32.totalorder %s242, 23
        %s248 = scalar_select %p247, %s242, 23
        %s249 = smul.addr %s248, 8
        %s250 = scalar_lea.vmem %s3, %s249
        %p251 = pneg %p109
        %p252 = pneg %p106
        %p253 = pneg %p135
        %p254 = pneg %p132
        %s255 = sand.u32 %s122, 1
        %s256 = sand.u32 %s122, 1
        %s257 = smul.addr %s256, 128
        %s258 = scalar_lea.vmem [#allocation2], %s257
        %p259 = pneg %p161
        %p260 = pneg %p158
        %s261 = sand.u32 %s148, 1
        %s262 = scalar_lea.sflag [#allocation4], %s261
        %s263 = sand.u32 %s148, 1
        %s264 = scalar_lea.vmem [#allocation3], %s263
        %s265 = smul.u32 16, %s20
        %s266 = ssub.s32 24, %s265
        %p267 = scmp.lt.s32.totalorder %s266, 16
        %s268 = scalar_select %p267, %s266, 16
        %s269 = smul.u32 64, %s268
        %p270 = scmp.lt.s32.totalorder %s265, 23
        %s271 = scalar_select %p270, %s265, 23
        %s272 = smul.addr %s271, 4
        %s273 = scalar_lea.vmem %s0, %s272
        %s274 = smul.u32 16, %s20
        %s275 = ssub.s32 24, %s274
        %p276 = scmp.lt.s32.totalorder %s275, 16
        %s277 = scalar_select %p276, %s275, 16
        %s278 = smul.u32 64, %s277
        %s279 = smul.u32 16, %s20
        %s280 = ssub.s32 24, %s279
        %p281 = scmp.lt.s32.totalorder %s280, 16
        %s282 = scalar_select %p281, %s280, 16
        %s283 = smul.u32 128, %s282
        %p284 = scmp.lt.s32.totalorder %s279, 23
        %s285 = scalar_select %p284, %s279, 23
        %s286 = smul.addr %s285, 8
        %s287 = scalar_lea.vmem %s3, %s286
        %s288 = smul.u32 16, %s20
        %s289 = ssub.s32 24, %s288
        %p290 = scmp.lt.s32.totalorder %s289, 16
        %s291 = scalar_select %p290, %s289, 16
        %s292 = smul.u32 128, %s291
        %s293 = smul.u32 16, %s20
        %s294 = ssub.s32 24, %s293
        %p295 = scmp.lt.s32.totalorder %s294, 16
        %s296 = scalar_select %p295, %s294, 16
        %s297 = smul.u32 128, %s296
        %v299 = vld [vmem:[%s273] sm:$0xf]
        %v300 = vld [vmem:[%s273 + $0x4] sm:$0xf]
        %v301 = vld [vmem:[%s273 + $0x8] sm:$0xf]
        %v302 = vld [vmem:[%s273 + $0xc] sm:$0xf]
        %v303 = vld [vmem:[%s273 + $0x10] sm:$0xf]
        %v304 = vld [vmem:[%s273 + $0x14] sm:$0xf]
        %v305 = vld [vmem:[%s273 + $0x18] sm:$0xf]
        %v306 = vld [vmem:[%s273 + $0x1c] sm:$0xf]
        %v307 = vld [vmem:[%s273 + $0x20] sm:$0xf]
        %v308 = vld [vmem:[%s273 + $0x24] sm:$0xf]
        %v309 = vld [vmem:[%s273 + $0x28] sm:$0xf]
        %v310 = vld [vmem:[%s273 + $0x2c] sm:$0xf]
        %v311 = vld [vmem:[%s273 + $0x30] sm:$0xf]
        %v312 = vld [vmem:[%s273 + $0x34] sm:$0xf]
        %v313 = vld [vmem:[%s273 + $0x38] sm:$0xf]
        %v314 = vld [vmem:[%s273 + $0x3c] sm:$0xf]
        %v315 = vunpack.c.l.bf16 %v299
        %v316 = vunpack.c.l.bf16 %v300
        %v317 = vunpack.c.l.bf16 %v301
        %v318 = vunpack.c.l.bf16 %v302
        %v319 = vunpack.c.l.bf16 %v303
        %v320 = vunpack.c.l.bf16 %v304
        %v321 = vunpack.c.l.bf16 %v305
        %v322 = vunpack.c.l.bf16 %v306
        %v323 = vunpack.c.l.bf16 %v307
        %v324 = vunpack.c.l.bf16 %v308
        %v325 = vunpack.c.l.bf16 %v309
        %v326 = vunpack.c.l.bf16 %v310
        %v327 = vunpack.c.l.bf16 %v311
        %v328 = vunpack.c.l.bf16 %v312
        %v329 = vunpack.c.l.bf16 %v313
        %v330 = vunpack.c.l.bf16 %v314
        %331 = vadd.xlane.f32.xlu0 %v315
        %v332 = vpop.xlane.xlu0 %331
        %333 = vadd.xlane.f32.xlu0 %v316
        %v334 = vpop.xlane.xlu0 %333
        %335 = vadd.xlane.f32.xlu0 %v317
        %v336 = vpop.xlane.xlu0 %335
        %337 = vadd.xlane.f32.xlu0 %v318
        %v338 = vpop.xlane.xlu0 %337
        %339 = vadd.xlane.f32.xlu0 %v319
        %v340 = vpop.xlane.xlu0 %339
        %341 = vadd.xlane.f32.xlu0 %v320
        %v342 = vpop.xlane.xlu0 %341
        %343 = vadd.xlane.f32.xlu0 %v321
        %v344 = vpop.xlane.xlu0 %343
        %345 = vadd.xlane.f32.xlu0 %v322
        %v346 = vpop.xlane.xlu0 %345
        %347 = vadd.xlane.f32.xlu0 %v323
        %v348 = vpop.xlane.xlu0 %347
        %349 = vadd.xlane.f32.xlu0 %v324
        %v350 = vpop.xlane.xlu0 %349
        %351 = vadd.xlane.f32.xlu0 %v325
        %v352 = vpop.xlane.xlu0 %351
        %353 = vadd.xlane.f32.xlu0 %v326
        %v354 = vpop.xlane.xlu0 %353
        %355 = vadd.xlane.f32.xlu0 %v327
        %v356 = vpop.xlane.xlu0 %355
        %357 = vadd.xlane.f32.xlu0 %v328
        %v358 = vpop.xlane.xlu0 %357
        %359 = vadd.xlane.f32.xlu0 %v329
        %v360 = vpop.xlane.xlu0 %359
        %361 = vadd.xlane.f32.xlu0 %v330
        %v362 = vpop.xlane.xlu0 %361
        %v363 = vrcp.pop 128.0
        %v364 = vmul.f32 %v332, %v363
        %v365 = vmul.f32 %v334, %v363
        %v366 = vmul.f32 %v336, %v363
        %v367 = vmul.f32 %v338, %v363
        %v368 = vmul.f32 %v340, %v363
        %v369 = vmul.f32 %v342, %v363
        %v370 = vmul.f32 %v344, %v363
        %v371 = vmul.f32 %v346, %v363
        %v372 = vmul.f32 %v348, %v363
        %v373 = vmul.f32 %v350, %v363
        %v374 = vmul.f32 %v352, %v363
        %v375 = vmul.f32 %v354, %v363
        %v376 = vmul.f32 %v356, %v363
        %v377 = vmul.f32 %v358, %v363
        %v378 = vmul.f32 %v360, %v363
        %v379 = vmul.f32 %v362, %v363
        %v380 = vmul.f32 %v315, %v315
        %v381 = vmul.f32 %v316, %v316
        %v382 = vmul.f32 %v317, %v317
        %v383 = vmul.f32 %v318, %v318
        %v384 = vmul.f32 %v319, %v319
        %v385 = vmul.f32 %v320, %v320
        %v386 = vmul.f32 %v321, %v321
        %v387 = vmul.f32 %v322, %v322
        %v388 = vmul.f32 %v323, %v323
        %v389 = vmul.f32 %v324, %v324
        %v390 = vmul.f32 %v325, %v325
        %v391 = vmul.f32 %v326, %v326
        %v392 = vmul.f32 %v327, %v327
        %v393 = vmul.f32 %v328, %v328
        %v394 = vmul.f32 %v329, %v329
        %v395 = vmul.f32 %v330, %v330
        %396 = vadd.xlane.f32.xlu0 %v380
        %v397 = vpop.xlane.xlu0 %396
        %398 = vadd.xlane.f32.xlu0 %v381
        %v399 = vpop.xlane.xlu0 %398
        %400 = vadd.xlane.f32.xlu0 %v382
        %v401 = vpop.xlane.xlu0 %400
        %402 = vadd.xlane.f32.xlu0 %v383
        %v403 = vpop.xlane.xlu0 %402
        %404 = vadd.xlane.f32.xlu0 %v384
        %v405 = vpop.xlane.xlu0 %404
        %406 = vadd.xlane.f32.xlu0 %v385
        %v407 = vpop.xlane.xlu0 %406
        %408 = vadd.xlane.f32.xlu0 %v386
        %v409 = vpop.xlane.xlu0 %408
        %410 = vadd.xlane.f32.xlu0 %v387
        %v411 = vpop.xlane.xlu0 %410
        %412 = vadd.xlane.f32.xlu0 %v388
        %v413 = vpop.xlane.xlu0 %412
        %414 = vadd.xlane.f32.xlu0 %v389
        %v415 = vpop.xlane.xlu0 %414
        %416 = vadd.xlane.f32.xlu0 %v390
        %v417 = vpop.xlane.xlu0 %416
        %418 = vadd.xlane.f32.xlu0 %v391
        %v419 = vpop.xlane.xlu0 %418
        %420 = vadd.xlane.f32.xlu0 %v392
        %v421 = vpop.xlane.xlu0 %420
        %422 = vadd.xlane.f32.xlu0 %v393
        %v423 = vpop.xlane.xlu0 %422
        %424 = vadd.xlane.f32.xlu0 %v394
        %v425 = vpop.xlane.xlu0 %424
        %426 = vadd.xlane.f32.xlu0 %v395
        %v427 = vpop.xlane.xlu0 %426
        %v428 = vmul.f32 %v397, %v363
        %v429 = vmul.f32 %v399, %v363
        %v430 = vmul.f32 %v401, %v363
        %v431 = vmul.f32 %v403, %v363
        %v432 = vmul.f32 %v405, %v363
        %v433 = vmul.f32 %v407, %v363
        %v434 = vmul.f32 %v409, %v363
        %v435 = vmul.f32 %v411, %v363
        %v436 = vmul.f32 %v413, %v363
        %v437 = vmul.f32 %v415, %v363
        %v438 = vmul.f32 %v417, %v363
        %v439 = vmul.f32 %v419, %v363
        %v440 = vmul.f32 %v421, %v363
        %v441 = vmul.f32 %v423, %v363
        %v442 = vmul.f32 %v425, %v363
        %v443 = vmul.f32 %v427, %v363
        %v444 = vmul.f32 %v364, %v364
        %v445 = vmul.f32 %v365, %v365
        %v446 = vmul.f32 %v366, %v366
        %v447 = vmul.f32 %v367, %v367
        %v448 = vmul.f32 %v368, %v368
        %v449 = vmul.f32 %v369, %v369
        %v450 = vmul.f32 %v370, %v370
        %v451 = vmul.f32 %v371, %v371
        %v452 = vmul.f32 %v372, %v372
        %v453 = vmul.f32 %v373, %v373
        %v454 = vmul.f32 %v374, %v374
        %v455 = vmul.f32 %v375, %v375
        %v456 = vmul.f32 %v376, %v376
        %v457 = vmul.f32 %v377, %v377
        %v458 = vmul.f32 %v378, %v378
        %v459 = vmul.f32 %v379, %v379
        %v460 = vsub.f32 %v428, %v444
        %v461 = vsub.f32 %v429, %v445
        %v462 = vsub.f32 %v430, %v446
        %v463 = vsub.f32 %v431, %v447
        %v464 = vsub.f32 %v432, %v448
        %v465 = vsub.f32 %v433, %v449
        %v466 = vsub.f32 %v434, %v450
        %v467 = vsub.f32 %v435, %v451
        %v468 = vsub.f32 %v436, %v452
        %v469 = vsub.f32 %v437, %v453
        %v470 = vsub.f32 %v438, %v454
        %v471 = vsub.f32 %v439, %v455
        %v472 = vsub.f32 %v440, %v456
        %v473 = vsub.f32 %v441, %v457
        %v474 = vsub.f32 %v442, %v458
        %v475 = vsub.f32 %v443, %v459
        %v476 = vmax.f32 %v460, 0.0
        %v477 = vmax.f32 %v461, 0.0
        %v478 = vmax.f32 %v462, 0.0
        %v479 = vmax.f32 %v463, 0.0
        %v480 = vmax.f32 %v464, 0.0
        %v481 = vmax.f32 %v465, 0.0
        %v482 = vmax.f32 %v466, 0.0
        %v483 = vmax.f32 %v467, 0.0
        %v484 = vmax.f32 %v468, 0.0
        %v485 = vmax.f32 %v469, 0.0
        %v486 = vmax.f32 %v470, 0.0
        %v487 = vmax.f32 %v471, 0.0
        %v488 = vmax.f32 %v472, 0.0
        %v489 = vmax.f32 %v473, 0.0
        %v490 = vmax.f32 %v474, 0.0
        %v491 = vmax.f32 %v475, 0.0
        %v492 = vsub.f32 %v315, %v364
        %v493 = vsub.f32 %v316, %v365
        %v494 = vsub.f32 %v317, %v366
        %v495 = vsub.f32 %v318, %v367
        %v496 = vsub.f32 %v319, %v368
        %v497 = vsub.f32 %v320, %v369
        %v498 = vsub.f32 %v321, %v370
        %v499 = vsub.f32 %v322, %v371
        %v500 = vsub.f32 %v323, %v372
        %v501 = vsub.f32 %v324, %v373
        %v502 = vsub.f32 %v325, %v374
        %v503 = vsub.f32 %v326, %v375
        %v504 = vsub.f32 %v327, %v376
        %v505 = vsub.f32 %v328, %v377
        %v506 = vsub.f32 %v329, %v378
        %v507 = vsub.f32 %v330, %v379
        %v508 = vadd.f32 %v476, 1e-12
        %v509 = vadd.f32 %v477, 1e-12
        %v510 = vadd.f32 %v478, 1e-12
        %v511 = vadd.f32 %v479, 1e-12
        %v512 = vadd.f32 %v480, 1e-12
        %v513 = vadd.f32 %v481, 1e-12
        %v514 = vadd.f32 %v482, 1e-12
        %v515 = vadd.f32 %v483, 1e-12
        %v516 = vadd.f32 %v484, 1e-12
        %v517 = vadd.f32 %v485, 1e-12
        %v518 = vadd.f32 %v486, 1e-12
        %v519 = vadd.f32 %v487, 1e-12
        %v520 = vadd.f32 %v488, 1e-12
        %v521 = vadd.f32 %v489, 1e-12
        %v522 = vadd.f32 %v490, 1e-12
        %v523 = vadd.f32 %v491, 1e-12
        %v524 = vrsqrt.pop %v508
        %v525 = vrsqrt.pop %v509
        %v526 = vrsqrt.pop %v510
        %v527 = vrsqrt.pop %v511
        %v528 = vrsqrt.pop %v512
        %v529 = vrsqrt.pop %v513
        %v530 = vrsqrt.pop %v514
        %v531 = vrsqrt.pop %v515
        %v532 = vrsqrt.pop %v516
        %v533 = vrsqrt.pop %v517
        %v534 = vrsqrt.pop %v518
        %v535 = vrsqrt.pop %v519
        %v536 = vrsqrt.pop %v520
        %v537 = vrsqrt.pop %v521
        %v538 = vrsqrt.pop %v522
        %v539 = vrsqrt.pop %v523
        %v540 = vmul.f32 %v492, %v524
        %v541 = vmul.f32 %v493, %v525
        %v542 = vmul.f32 %v494, %v526
        %v543 = vmul.f32 %v495, %v527
        %v544 = vmul.f32 %v496, %v528
        %v545 = vmul.f32 %v497, %v529
        %v546 = vmul.f32 %v498, %v530
        %v547 = vmul.f32 %v499, %v531
        %v548 = vmul.f32 %v500, %v532
        %v549 = vmul.f32 %v501, %v533
        %v550 = vmul.f32 %v502, %v534
        %v551 = vmul.f32 %v503, %v535
        %v552 = vmul.f32 %v504, %v536
        %v553 = vmul.f32 %v505, %v537
        %v554 = vmul.f32 %v506, %v538
        %v555 = vmul.f32 %v507, %v539
        %v556 = vpack.c.bf16 %v541, %v540
        %v557 = vpack.c.bf16 %v543, %v542
        %v558 = vpack.c.bf16 %v545, %v544
        %v559 = vpack.c.bf16 %v547, %v546
        %v560 = vpack.c.bf16 %v549, %v548
        %v561 = vpack.c.bf16 %v551, %v550
        %v562 = vpack.c.bf16 %v553, %v552
        %v563 = vpack.c.bf16 %v555, %v554
        %v564 = vld [vmem:[%s1] sm:$0xf]
        %v565 = vld [vmem:[%s1 + $0x4] sm:$0xf]
        %v566 = vld [vmem:[%s1 + $0x8] sm:$0xf]
        %v567 = vld [vmem:[%s1 + $0xc] sm:$0xf]
        %v568 = vld [vmem:[%s1 + $0x10] sm:$0xf]
        %v569 = vld [vmem:[%s1 + $0x14] sm:$0xf]
        %v570 = vld [vmem:[%s1 + $0x18] sm:$0xf]
        %v571 = vld [vmem:[%s1 + $0x1c] sm:$0xf]
        %v572 = vld [vmem:[%s1 + $0x20] sm:$0xf]
        %v573 = vld [vmem:[%s1 + $0x24] sm:$0xf]
        %v574 = vld [vmem:[%s1 + $0x28] sm:$0xf]
        %v575 = vld [vmem:[%s1 + $0x2c] sm:$0xf]
        %v576 = vld [vmem:[%s1 + $0x30] sm:$0xf]
        %v577 = vld [vmem:[%s1 + $0x34] sm:$0xf]
        %v578 = vld [vmem:[%s1 + $0x38] sm:$0xf]
        %v579 = vld [vmem:[%s1 + $0x3c] sm:$0xf]
        %v580 = vld [vmem:[%s2] sm:$0x1]
        %v582 = vlaneseq
        %v583 = vshrl.u32 %v582, 7
        %v584 = vsub.s32 0, %v583
        %v585 = vrot.slane %v580, %v584
        %v603 = vunpack.c.l.b16 %v564
        %v604 = vunpack.c.l.b16 %v565
        %v605 = vunpack.c.l.b16 %v566
        %v606 = vunpack.c.l.b16 %v567
        %v607 = vunpack.c.l.b16 %v568
        %v608 = vunpack.c.l.b16 %v569
        %v609 = vunpack.c.l.b16 %v570
        %v610 = vunpack.c.l.b16 %v571
        %v611 = vunpack.c.l.b16 %v572
        %v612 = vunpack.c.l.b16 %v573
        %v613 = vunpack.c.l.b16 %v574
        %v614 = vunpack.c.l.b16 %v575
        %v615 = vunpack.c.l.b16 %v576
        %v616 = vunpack.c.l.b16 %v577
        %v617 = vunpack.c.l.b16 %v578
        %v618 = vunpack.c.l.b16 %v579
        %v619 = vpack.c.b16 %v604, %v603
        %v620 = vpack.c.b16 %v606, %v605
        %v621 = vpack.c.b16 %v608, %v607
        %v622 = vpack.c.b16 %v610, %v609
        %v623 = vpack.c.b16 %v612, %v611
        %v624 = vpack.c.b16 %v614, %v613
        %v625 = vpack.c.b16 %v616, %v615
        %v626 = vpack.c.b16 %v618, %v617
        %635 = vmatprep.subr.bf16.mxu0 0
        %636 = vmatpush1.bf16.msra.mxu0 %v619
        %637 = vmatprep.subr.bf16.mxu0 0
        %638 = vmatpush1.bf16.msra.mxu0 %v620
        %639 = vmatprep.subr.bf16.mxu0 0
        %640 = vmatpush1.bf16.msra.mxu0 %v621
        %641 = vmatprep.subr.bf16.mxu0 0
        %642 = vmatpush1.bf16.msra.mxu0 %v622
        %643 = vmatprep.subr.bf16.mxu0 0
        %644 = vmatpush1.bf16.msra.mxu0 %v623
        %645 = vmatprep.subr.bf16.mxu0 0
        %646 = vmatpush1.bf16.msra.mxu0 %v624
        %647 = vmatprep.subr.bf16.mxu0 0
        %648 = vmatpush1.bf16.msra.mxu0 %v625
        %649 = vmatprep.subr.bf16.mxu0 0
        %650 = vmatpush1.bf16.msra.mxu0 %v626
        %651 = vmatprep.subr.bf16.mxu0 0
        %652 = vmatpush1.bf16.msra.mxu0 0
        %653 = vmatprep.subr.bf16.mxu0 0
        %654 = vmatpush1.bf16.msra.mxu0 0
        %655 = vmatprep.subr.bf16.mxu0 0
        %656 = vmatpush1.bf16.msra.mxu0 0
        %657 = vmatprep.subr.bf16.mxu0 0
        %658 = vmatpush1.bf16.msra.mxu0 0
        %659 = vmatprep.subr.bf16.mxu0 0
        %660 = vmatpush1.bf16.msra.mxu0 0
        %661 = vmatprep.subr.bf16.mxu0 0
        %662 = vmatpush1.bf16.msra.mxu0 0
        %663 = vmatprep.subr.bf16.mxu0 0
        %664 = vmatpush1.bf16.msra.mxu0 0
        %665 = vmatprep.subr.bf16.mxu0 0
        %666 = vmatpush1.bf16.msra.mxu0 0
        %667 = vmatprep.mubr.bf16.mxu0 0
        %668 = vmatmul.mubr.bf16.gmra.mrb[0].mxu0 %v556
        %v669 = vpop.f32.mrb[0].mxu0
        %v670 = vadd.f32 %v585, %v669
        %v671 = vpop.f32.mrb[0].mxu0
        %v672 = vpop.f32.mrb[0].mxu0
        %v673 = vadd.f32 %v585, %v672
        %v674 = vpop.f32.mrb[0].mxu0
        %675 = vmatprep.mubr.bf16.mxu0 0
        %676 = vmatmul.mubr.bf16.gmra.mrb[0].mxu0 %v557
        %v677 = vpop.f32.mrb[0].mxu0
        %v678 = vadd.f32 %v585, %v677
        %v679 = vpop.f32.mrb[0].mxu0
        %v680 = vpop.f32.mrb[0].mxu0
        %v681 = vadd.f32 %v585, %v680
        %v682 = vpop.f32.mrb[0].mxu0
        %683 = vmatprep.mubr.bf16.mxu0 0
        %684 = vmatmul.mubr.bf16.gmra.mrb[0].mxu0 %v558
        %v685 = vpop.f32.mrb[0].mxu0
        %v686 = vadd.f32 %v585, %v685
        %v687 = vpop.f32.mrb[0].mxu0
        %v688 = vpop.f32.mrb[0].mxu0
        %v689 = vadd.f32 %v585, %v688
        %v690 = vpop.f32.mrb[0].mxu0
        %691 = vmatprep.mubr.bf16.mxu0 0
        %692 = vmatmul.mubr.bf16.gmra.mrb[0].mxu0 %v559
        %v693 = vpop.f32.mrb[0].mxu0
        %v694 = vadd.f32 %v585, %v693
        %v695 = vpop.f32.mrb[0].mxu0
        %v696 = vpop.f32.mrb[0].mxu0
        %v697 = vadd.f32 %v585, %v696
        %v698 = vpop.f32.mrb[0].mxu0
        %699 = vmatprep.mubr.bf16.mxu0 0
        %700 = vmatmul.mubr.bf16.gmra.mrb[0].mxu0 %v560
        %v701 = vpop.f32.mrb[0].mxu0
        %v702 = vadd.f32 %v585, %v701
        %v703 = vpop.f32.mrb[0].mxu0
        %v704 = vpop.f32.mrb[0].mxu0
        %v705 = vadd.f32 %v585, %v704
        %v706 = vpop.f32.mrb[0].mxu0
        %707 = vmatprep.mubr.bf16.mxu0 0
        %708 = vmatmul.mubr.bf16.gmra.mrb[0].mxu0 %v561
        %v709 = vpop.f32.mrb[0].mxu0
        %v710 = vadd.f32 %v585, %v709
        %v711 = vpop.f32.mrb[0].mxu0
        %v712 = vpop.f32.mrb[0].mxu0
        %v713 = vadd.f32 %v585, %v712
        %v714 = vpop.f32.mrb[0].mxu0
        %715 = vmatprep.mubr.bf16.mxu0 0
        %716 = vmatmul.mubr.bf16.gmra.mrb[0].mxu0 %v562
        %v717 = vpop.f32.mrb[0].mxu0
        %v718 = vadd.f32 %v585, %v717
        %v719 = vpop.f32.mrb[0].mxu0
        %v720 = vpop.f32.mrb[0].mxu0
        %v721 = vadd.f32 %v585, %v720
        %v722 = vpop.f32.mrb[0].mxu0
        %723 = vmatprep.mubr.bf16.mxu0 0
        %724 = vmatmul.mubr.bf16.gmra.mrb[0].mxu0 %v563
        %v725 = vpop.f32.mrb[0].mxu0
        %v726 = vadd.f32 %v585, %v725
        %v727 = vpop.f32.mrb[0].mxu0
        %v728 = vpop.f32.mrb[0].mxu0
        %v729 = vadd.f32 %v585, %v728
        %v730 = vpop.f32.mrb[0].mxu0
        %731 = vdwg.mxu0
        %v732 = vlaneseq
        %v733 = vand.u32 %v732, 127
        %vm734 = vcmp.lt.s32.totalorder %v733, 8
        %vm735 = vcmask 64512
        %736 = vst.msk [vmem:[%s258] sm:$0xff] %vm735, %v670
        %737 = vst.msk [vmem:[%s258 + $0x8] sm:$0xff] %vm735, %v673
        %738 = vst.msk [vmem:[%s258 + $0x10] sm:$0xff] %vm735, %v678
        %739 = vst.msk [vmem:[%s258 + $0x18] sm:$0xff] %vm735, %v681
        %740 = vst.msk [vmem:[%s258 + $0x20] sm:$0xff] %vm735, %v686
        %741 = vst.msk [vmem:[%s258 + $0x28] sm:$0xff] %vm735, %v689
        %742 = vst.msk [vmem:[%s258 + $0x30] sm:$0xff] %vm735, %v694
        %743 = vst.msk [vmem:[%s258 + $0x38] sm:$0xff] %vm735, %v697
        %744 = vst.msk [vmem:[%s258 + $0x40] sm:$0xff] %vm735, %v702
        %745 = vst.msk [vmem:[%s258 + $0x48] sm:$0xff] %vm735, %v705
        %746 = vst.msk [vmem:[%s258 + $0x50] sm:$0xff] %vm735, %v710
        %747 = vst.msk [vmem:[%s258 + $0x58] sm:$0xff] %vm735, %v713
        %748 = vst.msk [vmem:[%s258 + $0x60] sm:$0xff] %vm735, %v718
        %749 = vst.msk [vmem:[%s258 + $0x68] sm:$0xff] %vm735, %v721
        %750 = vst.msk [vmem:[%s258 + $0x70] sm:$0xff] %vm735, %v726
        %751 = vst.msk [vmem:[%s258 + $0x78] sm:$0xff] %vm735, %v729
        %v752 = vsel %vm734, %v670, -1e+30
        %v753 = vsel %vm734, %v673, -1e+30
        %v754 = vsel %vm734, %v678, -1e+30
        %v755 = vsel %vm734, %v681, -1e+30
        %v756 = vsel %vm734, %v686, -1e+30
        %v757 = vsel %vm734, %v689, -1e+30
        %v758 = vsel %vm734, %v694, -1e+30
        %v759 = vsel %vm734, %v697, -1e+30
        %v760 = vsel %vm734, %v702, -1e+30
        %v761 = vsel %vm734, %v705, -1e+30
        %v762 = vsel %vm734, %v710, -1e+30
        %v763 = vsel %vm734, %v713, -1e+30
        %v764 = vsel %vm734, %v718, -1e+30
        %v765 = vsel %vm734, %v721, -1e+30
        %v766 = vsel %vm734, %v726, -1e+30
        %v767 = vsel %vm734, %v729, -1e+30
        %768 = vmax.xlane.f32.xlu0 %v752
        %v769 = vpop.xlane.xlu0 %768
        %770 = vmax.xlane.f32.xlu0 %v753
        %v771 = vpop.xlane.xlu0 %770
        %772 = vmax.xlane.f32.xlu0 %v754
        %v773 = vpop.xlane.xlu0 %772
        %774 = vmax.xlane.f32.xlu0 %v755
        %v775 = vpop.xlane.xlu0 %774
        %776 = vmax.xlane.f32.xlu0 %v756
        %v777 = vpop.xlane.xlu0 %776
        %778 = vmax.xlane.f32.xlu0 %v757
        %v779 = vpop.xlane.xlu0 %778
        %780 = vmax.xlane.f32.xlu0 %v758
        %v781 = vpop.xlane.xlu0 %780
        %782 = vmax.xlane.f32.xlu0 %v759
        %v783 = vpop.xlane.xlu0 %782
        %784 = vmax.xlane.f32.xlu0 %v760
        %v785 = vpop.xlane.xlu0 %784
        %786 = vmax.xlane.f32.xlu0 %v761
        %v787 = vpop.xlane.xlu0 %786
        %788 = vmax.xlane.f32.xlu0 %v762
        %v789 = vpop.xlane.xlu0 %788
        %790 = vmax.xlane.f32.xlu0 %v763
        %v791 = vpop.xlane.xlu0 %790
        %792 = vmax.xlane.f32.xlu0 %v764
        %v793 = vpop.xlane.xlu0 %792
        %794 = vmax.xlane.f32.xlu0 %v765
        %v795 = vpop.xlane.xlu0 %794
        %796 = vmax.xlane.f32.xlu0 %v766
        %v797 = vpop.xlane.xlu0 %796
        %798 = vmax.xlane.f32.xlu0 %v767
        %v799 = vpop.xlane.xlu0 %798
        %v800 = vsub.f32 %v752, %v769
        %v801 = vsub.f32 %v753, %v771
        %v802 = vsub.f32 %v754, %v773
        %v803 = vsub.f32 %v755, %v775
        %v804 = vsub.f32 %v756, %v777
        %v805 = vsub.f32 %v757, %v779
        %v806 = vsub.f32 %v758, %v781
        %v807 = vsub.f32 %v759, %v783
        %v808 = vsub.f32 %v760, %v785
        %v809 = vsub.f32 %v761, %v787
        %v810 = vsub.f32 %v762, %v789
        %v811 = vsub.f32 %v763, %v791
        %v812 = vsub.f32 %v764, %v793
        %v813 = vsub.f32 %v765, %v795
        %v814 = vsub.f32 %v766, %v797
        %v815 = vsub.f32 %v767, %v799
        %v816 = vmul.f32 %v800, 1.442695
        %v817 = vpow.pop %v816
        %v818 = vmul.f32 %v801, 1.442695
        %v819 = vpow.pop %v818
        %v820 = vmul.f32 %v802, 1.442695
        %v821 = vpow.pop %v820
        %v822 = vmul.f32 %v803, 1.442695
        %v823 = vpow.pop %v822
        %v824 = vmul.f32 %v804, 1.442695
        %v825 = vpow.pop %v824
        %v826 = vmul.f32 %v805, 1.442695
        %v827 = vpow.pop %v826
        %v828 = vmul.f32 %v806, 1.442695
        %v829 = vpow.pop %v828
        %v830 = vmul.f32 %v807, 1.442695
        %v831 = vpow.pop %v830
        %v832 = vmul.f32 %v808, 1.442695
        %v833 = vpow.pop %v832
        %v834 = vmul.f32 %v809, 1.442695
        %v835 = vpow.pop %v834
        %v836 = vmul.f32 %v810, 1.442695
        %v837 = vpow.pop %v836
        %v838 = vmul.f32 %v811, 1.442695
        %v839 = vpow.pop %v838
        %v840 = vmul.f32 %v812, 1.442695
        %v841 = vpow.pop %v840
        %v842 = vmul.f32 %v813, 1.442695
        %v843 = vpow.pop %v842
        %v844 = vmul.f32 %v814, 1.442695
        %v845 = vpow.pop %v844
        %v846 = vmul.f32 %v815, 1.442695
        %v847 = vpow.pop %v846
        %848 = vadd.xlane.f32.xlu0 %v817
        %v849 = vpop.xlane.xlu0 %848
        %850 = vadd.xlane.f32.xlu0 %v819
        %v851 = vpop.xlane.xlu0 %850
        %852 = vadd.xlane.f32.xlu0 %v821
        %v853 = vpop.xlane.xlu0 %852
        %854 = vadd.xlane.f32.xlu0 %v823
        %v855 = vpop.xlane.xlu0 %854
        %856 = vadd.xlane.f32.xlu0 %v825
        %v857 = vpop.xlane.xlu0 %856
        %858 = vadd.xlane.f32.xlu0 %v827
        %v859 = vpop.xlane.xlu0 %858
        %860 = vadd.xlane.f32.xlu0 %v829
        %v861 = vpop.xlane.xlu0 %860
        %862 = vadd.xlane.f32.xlu0 %v831
        %v863 = vpop.xlane.xlu0 %862
        %864 = vadd.xlane.f32.xlu0 %v833
        %v865 = vpop.xlane.xlu0 %864
        %866 = vadd.xlane.f32.xlu0 %v835
        %v867 = vpop.xlane.xlu0 %866
        %868 = vadd.xlane.f32.xlu0 %v837
        %v869 = vpop.xlane.xlu0 %868
        %870 = vadd.xlane.f32.xlu0 %v839
        %v871 = vpop.xlane.xlu0 %870
        %872 = vadd.xlane.f32.xlu0 %v841
        %v873 = vpop.xlane.xlu0 %872
        %874 = vadd.xlane.f32.xlu0 %v843
        %v875 = vpop.xlane.xlu0 %874
        %876 = vadd.xlane.f32.xlu0 %v845
        %v877 = vpop.xlane.xlu0 %876
        %878 = vadd.xlane.f32.xlu0 %v847
        %v879 = vpop.xlane.xlu0 %878
        %v880 = vlog2.pop %v849
        %v881 = vmul.f32 %v880, 0.6931472
        %v882 = vlog2.pop %v851
        %v883 = vmul.f32 %v882, 0.6931472
        %v884 = vlog2.pop %v853
        %v885 = vmul.f32 %v884, 0.6931472
        %v886 = vlog2.pop %v855
        %v887 = vmul.f32 %v886, 0.6931472
        %v888 = vlog2.pop %v857
        %v889 = vmul.f32 %v888, 0.6931472
        %v890 = vlog2.pop %v859
        %v891 = vmul.f32 %v890, 0.6931472
        %v892 = vlog2.pop %v861
        %v893 = vmul.f32 %v892, 0.6931472
        %v894 = vlog2.pop %v863
        %v895 = vmul.f32 %v894, 0.6931472
        %v896 = vlog2.pop %v865
        %v897 = vmul.f32 %v896, 0.6931472
        %v898 = vlog2.pop %v867
        %v899 = vmul.f32 %v898, 0.6931472
        %v900 = vlog2.pop %v869
        %v901 = vmul.f32 %v900, 0.6931472
        %v902 = vlog2.pop %v871
        %v903 = vmul.f32 %v902, 0.6931472
        %v904 = vlog2.pop %v873
        %v905 = vmul.f32 %v904, 0.6931472
        %v906 = vlog2.pop %v875
        %v907 = vmul.f32 %v906, 0.6931472
        %v908 = vlog2.pop %v877
        %v909 = vmul.f32 %v908, 0.6931472
        %v910 = vlog2.pop %v879
        %v911 = vmul.f32 %v910, 0.6931472
        %v912 = vadd.f32 %v769, %v881
        %v913 = vadd.f32 %v771, %v883
        %v914 = vadd.f32 %v773, %v885
        %v915 = vadd.f32 %v775, %v887
        %v916 = vadd.f32 %v777, %v889
        %v917 = vadd.f32 %v779, %v891
        %v918 = vadd.f32 %v781, %v893
        %v919 = vadd.f32 %v783, %v895
        %v920 = vadd.f32 %v785, %v897
        %v921 = vadd.f32 %v787, %v899
        %v922 = vadd.f32 %v789, %v901
        %v923 = vadd.f32 %v791, %v903
        %v924 = vadd.f32 %v793, %v905
        %v925 = vadd.f32 %v795, %v907
        %v926 = vadd.f32 %v797, %v909
        %v927 = vadd.f32 %v799, %v911
        %v928 = vld [vmem:[%s287] sm:$0xff]
        %v929 = vld [vmem:[%s287 + $0x8] sm:$0xff]
        %v930 = vld [vmem:[%s287 + $0x10] sm:$0xff]
        %v931 = vld [vmem:[%s287 + $0x18] sm:$0xff]
        %v932 = vld [vmem:[%s287 + $0x20] sm:$0xff]
        %v933 = vld [vmem:[%s287 + $0x28] sm:$0xff]
        %v934 = vld [vmem:[%s287 + $0x30] sm:$0xff]
        %v935 = vld [vmem:[%s287 + $0x38] sm:$0xff]
        %v936 = vld [vmem:[%s287 + $0x40] sm:$0xff]
        %v937 = vld [vmem:[%s287 + $0x48] sm:$0xff]
        %v938 = vld [vmem:[%s287 + $0x50] sm:$0xff]
        %v939 = vld [vmem:[%s287 + $0x58] sm:$0xff]
        %v940 = vld [vmem:[%s287 + $0x60] sm:$0xff]
        %v941 = vld [vmem:[%s287 + $0x68] sm:$0xff]
        %v942 = vld [vmem:[%s287 + $0x70] sm:$0xff]
        %v943 = vld [vmem:[%s287 + $0x78] sm:$0xff]
        %944 = vset.pattern.permute.xlu0 0
        %945 = vperm.xlu0 %944, %v928
        %v946 = vpop.permute.xlu0 %945
        %947 = vset.pattern.permute.xlu0 0
        %948 = vperm.xlu0 %947, %v929
        %v949 = vpop.permute.xlu0 %948
        %950 = vset.pattern.permute.xlu0 0
        %951 = vperm.xlu0 %950, %v930
        %v952 = vpop.permute.xlu0 %951
        %953 = vset.pattern.permute.xlu0 0
        %954 = vperm.xlu0 %953, %v931
        %v955 = vpop.permute.xlu0 %954
        %956 = vset.pattern.permute.xlu0 0
        %957 = vperm.xlu0 %956, %v932
        %v958 = vpop.permute.xlu0 %957
        %959 = vset.pattern.permute.xlu0 0
        %960 = vperm.xlu0 %959, %v933
        %v961 = vpop.permute.xlu0 %960
        %962 = vset.pattern.permute.xlu0 0
        %963 = vperm.xlu0 %962, %v934
        %v964 = vpop.permute.xlu0 %963
        %965 = vset.pattern.permute.xlu0 0
        %966 = vperm.xlu0 %965, %v935
        %v967 = vpop.permute.xlu0 %966
        %968 = vset.pattern.permute.xlu0 0
        %969 = vperm.xlu0 %968, %v936
        %v970 = vpop.permute.xlu0 %969
        %971 = vset.pattern.permute.xlu0 0
        %972 = vperm.xlu0 %971, %v937
        %v973 = vpop.permute.xlu0 %972
        %974 = vset.pattern.permute.xlu0 0
        %975 = vperm.xlu0 %974, %v938
        %v976 = vpop.permute.xlu0 %975
        %977 = vset.pattern.permute.xlu0 0
        %978 = vperm.xlu0 %977, %v939
        %v979 = vpop.permute.xlu0 %978
        %980 = vset.pattern.permute.xlu0 0
        %981 = vperm.xlu0 %980, %v940
        %v982 = vpop.permute.xlu0 %981
        %983 = vset.pattern.permute.xlu0 0
        %984 = vperm.xlu0 %983, %v941
        %v985 = vpop.permute.xlu0 %984
        %986 = vset.pattern.permute.xlu0 0
        %987 = vperm.xlu0 %986, %v942
        %v988 = vpop.permute.xlu0 %987
        %989 = vset.pattern.permute.xlu0 0
        %990 = vperm.xlu0 %989, %v943
        %v991 = vpop.permute.xlu0 %990
        %vm992 = vcmp.eq.s32.totalorder %v733, %v946
        %vm993 = vcmp.eq.s32.totalorder %v733, %v949
        %vm994 = vcmp.eq.s32.totalorder %v733, %v952
        %vm995 = vcmp.eq.s32.totalorder %v733, %v955
        %vm996 = vcmp.eq.s32.totalorder %v733, %v958
        %vm997 = vcmp.eq.s32.totalorder %v733, %v961
        %vm998 = vcmp.eq.s32.totalorder %v733, %v964
        %vm999 = vcmp.eq.s32.totalorder %v733, %v967
        %vm1000 = vcmp.eq.s32.totalorder %v733, %v970
        %vm1001 = vcmp.eq.s32.totalorder %v733, %v973
        %vm1002 = vcmp.eq.s32.totalorder %v733, %v976
        %vm1003 = vcmp.eq.s32.totalorder %v733, %v979
        %vm1004 = vcmp.eq.s32.totalorder %v733, %v982
        %vm1005 = vcmp.eq.s32.totalorder %v733, %v985
        %vm1006 = vcmp.eq.s32.totalorder %v733, %v988
        %vm1007 = vcmp.eq.s32.totalorder %v733, %v991
        %vm1008 = vmand %vm992, %vm734
        %vm1009 = vmand %vm993, %vm734
        %vm1010 = vmand %vm994, %vm734
        %vm1011 = vmand %vm995, %vm734
        %vm1012 = vmand %vm996, %vm734
        %vm1013 = vmand %vm997, %vm734
        %vm1014 = vmand %vm998, %vm734
        %vm1015 = vmand %vm999, %vm734
        %vm1016 = vmand %vm1000, %vm734
        %vm1017 = vmand %vm1001, %vm734
        %vm1018 = vmand %vm1002, %vm734
        %vm1019 = vmand %vm1003, %vm734
        %vm1020 = vmand %vm1004, %vm734
        %vm1021 = vmand %vm1005, %vm734
        %vm1022 = vmand %vm1006, %vm734
        %vm1023 = vmand %vm1007, %vm734
        %v1024 = vsel %vm1008, %v670, 0.0
        %v1025 = vsel %vm1009, %v673, 0.0
        %v1026 = vsel %vm1010, %v678, 0.0
        %v1027 = vsel %vm1011, %v681, 0.0
        %v1028 = vsel %vm1012, %v686, 0.0
        %v1029 = vsel %vm1013, %v689, 0.0
        %v1030 = vsel %vm1014, %v694, 0.0
        %v1031 = vsel %vm1015, %v697, 0.0
        %v1032 = vsel %vm1016, %v702, 0.0
        %v1033 = vsel %vm1017, %v705, 0.0
        %v1034 = vsel %vm1018, %v710, 0.0
        %v1035 = vsel %vm1019, %v713, 0.0
        %v1036 = vsel %vm1020, %v718, 0.0
        %v1037 = vsel %vm1021, %v721, 0.0
        %v1038 = vsel %vm1022, %v726, 0.0
        %v1039 = vsel %vm1023, %v729, 0.0
        %1040 = vadd.xlane.f32.xlu0 %v1024
        %v1041 = vpop.xlane.xlu0 %1040
        %1042 = vadd.xlane.f32.xlu0 %v1025
        %v1043 = vpop.xlane.xlu0 %1042
        %1044 = vadd.xlane.f32.xlu0 %v1026
        %v1045 = vpop.xlane.xlu0 %1044
        %1046 = vadd.xlane.f32.xlu0 %v1027
        %v1047 = vpop.xlane.xlu0 %1046
        %1048 = vadd.xlane.f32.xlu0 %v1028
        %v1049 = vpop.xlane.xlu0 %1048
        %1050 = vadd.xlane.f32.xlu0 %v1029
        %v1051 = vpop.xlane.xlu0 %1050
        %1052 = vadd.xlane.f32.xlu0 %v1030
        %v1053 = vpop.xlane.xlu0 %1052
        %1054 = vadd.xlane.f32.xlu0 %v1031
        %v1055 = vpop.xlane.xlu0 %1054
        %1056 = vadd.xlane.f32.xlu0 %v1032
        %v1057 = vpop.xlane.xlu0 %1056
        %1058 = vadd.xlane.f32.xlu0 %v1033
        %v1059 = vpop.xlane.xlu0 %1058
        %1060 = vadd.xlane.f32.xlu0 %v1034
        %v1061 = vpop.xlane.xlu0 %1060
        %1062 = vadd.xlane.f32.xlu0 %v1035
        %v1063 = vpop.xlane.xlu0 %1062
        %1064 = vadd.xlane.f32.xlu0 %v1036
        %v1065 = vpop.xlane.xlu0 %1064
        %1066 = vadd.xlane.f32.xlu0 %v1037
        %v1067 = vpop.xlane.xlu0 %1066
        %1068 = vadd.xlane.f32.xlu0 %v1038
        %v1069 = vpop.xlane.xlu0 %1068
        %1070 = vadd.xlane.f32.xlu0 %v1039
        %v1071 = vpop.xlane.xlu0 %1070
        %v1072 = vsub.f32 %v912, %v1041
        %v1073 = vsub.f32 %v913, %v1043
        %v1074 = vsub.f32 %v914, %v1045
        %v1075 = vsub.f32 %v915, %v1047
        %v1076 = vsub.f32 %v916, %v1049
        %v1077 = vsub.f32 %v917, %v1051
        %v1078 = vsub.f32 %v918, %v1053
        %v1079 = vsub.f32 %v919, %v1055
        %v1080 = vsub.f32 %v920, %v1057
        %v1081 = vsub.f32 %v921, %v1059
        %v1082 = vsub.f32 %v922, %v1061
        %v1083 = vsub.f32 %v923, %v1063
        %v1084 = vsub.f32 %v924, %v1065
        %v1085 = vsub.f32 %v925, %v1067
        %v1086 = vsub.f32 %v926, %v1069
        %v1087 = vsub.f32 %v927, %v1071
        %v1088 = vlaneseq
        %v1089 = vshrl.u32 %v1088, 7
        %v1090 = vadd.s32 %v1089, 8
        %v1091 = vadd.s32 %v1089, 16
        %v1092 = vadd.s32 %v1089, 24
        %v1093 = vadd.s32 %v1089, 32
        %v1094 = vadd.s32 %v1089, 40
        %v1095 = vadd.s32 %v1089, 48
        %v1096 = vadd.s32 %v1089, 56
        %v1097 = vadd.s32 %v1089, 64
        %v1098 = vadd.s32 %v1089, 72
        %v1099 = vadd.s32 %v1089, 80
        %v1100 = vadd.s32 %v1089, 88
        %v1101 = vadd.s32 %v1089, 96
        %v1102 = vadd.s32 %v1089, 104
        %v1103 = vadd.s32 %v1089, 112
        %v1104 = vadd.s32 %v1089, 120
        %s1105 = smul.u32 %s20, 128
        %v1106 = vstv %s1105
        %v1107 = vadd.s32 %v1089, %v1106
        %v1108 = vadd.s32 %v1090, %v1106
        %v1109 = vadd.s32 %v1091, %v1106
        %v1110 = vadd.s32 %v1092, %v1106
        %v1111 = vadd.s32 %v1093, %v1106
        %v1112 = vadd.s32 %v1094, %v1106
        %v1113 = vadd.s32 %v1095, %v1106
        %v1114 = vadd.s32 %v1096, %v1106
        %v1115 = vadd.s32 %v1097, %v1106
        %v1116 = vadd.s32 %v1098, %v1106
        %v1117 = vadd.s32 %v1099, %v1106
        %v1118 = vadd.s32 %v1100, %v1106
        %v1119 = vadd.s32 %v1101, %v1106
        %v1120 = vadd.s32 %v1102, %v1106
        %v1121 = vadd.s32 %v1103, %v1106
        %v1122 = vadd.s32 %v1104, %v1106
        %vm1123 = vcmp.lt.s32.totalorder %v928, 8
        %vm1124 = vcmp.lt.s32.totalorder %v929, 8
        %vm1125 = vcmp.lt.s32.totalorder %v930, 8
        %vm1126 = vcmp.lt.s32.totalorder %v931, 8
        %vm1127 = vcmp.lt.s32.totalorder %v932, 8
        %vm1128 = vcmp.lt.s32.totalorder %v933, 8
        %vm1129 = vcmp.lt.s32.totalorder %v934, 8
        %vm1130 = vcmp.lt.s32.totalorder %v935, 8
        %vm1131 = vcmp.lt.s32.totalorder %v936, 8
        %vm1132 = vcmp.lt.s32.totalorder %v937, 8
        %vm1133 = vcmp.lt.s32.totalorder %v938, 8
        %vm1134 = vcmp.lt.s32.totalorder %v939, 8
        %vm1135 = vcmp.lt.s32.totalorder %v940, 8
        %vm1136 = vcmp.lt.s32.totalorder %v941, 8
        %vm1137 = vcmp.lt.s32.totalorder %v942, 8
        %vm1138 = vcmp.lt.s32.totalorder %v943, 8
        %vm1139 = vcmp.lt.s32.totalorder %v1107, 192
        %vm1140 = vcmp.lt.s32.totalorder %v1108, 192
        %vm1141 = vcmp.lt.s32.totalorder %v1109, 192
        %vm1142 = vcmp.lt.s32.totalorder %v1110, 192
        %vm1143 = vcmp.lt.s32.totalorder %v1111, 192
        %vm1144 = vcmp.lt.s32.totalorder %v1112, 192
        %vm1145 = vcmp.lt.s32.totalorder %v1113, 192
        %vm1146 = vcmp.lt.s32.totalorder %v1114, 192
        %vm1147 = vcmp.lt.s32.totalorder %v1115, 192
        %vm1148 = vcmp.lt.s32.totalorder %v1116, 192
        %vm1149 = vcmp.lt.s32.totalorder %v1117, 192
        %vm1150 = vcmp.lt.s32.totalorder %v1118, 192
        %vm1151 = vcmp.lt.s32.totalorder %v1119, 192
        %vm1152 = vcmp.lt.s32.totalorder %v1120, 192
        %vm1153 = vcmp.lt.s32.totalorder %v1121, 192
        %vm1154 = vcmp.lt.s32.totalorder %v1122, 192
        %vm1155 = vmand %vm1123, %vm1139
        %vm1156 = vmand %vm1124, %vm1140
        %vm1157 = vmand %vm1125, %vm1141
        %vm1158 = vmand %vm1126, %vm1142
        %vm1159 = vmand %vm1127, %vm1143
        %vm1160 = vmand %vm1128, %vm1144
        %vm1161 = vmand %vm1129, %vm1145
        %vm1162 = vmand %vm1130, %vm1146
        %vm1163 = vmand %vm1131, %vm1147
        %vm1164 = vmand %vm1132, %vm1148
        %vm1165 = vmand %vm1133, %vm1149
        %vm1166 = vmand %vm1134, %vm1150
        %vm1167 = vmand %vm1135, %vm1151
        %vm1168 = vmand %vm1136, %vm1152
        %vm1169 = vmand %vm1137, %vm1153
        %vm1170 = vmand %vm1138, %vm1154
        %v1171 = vsel %vm1155, %v1072, 0.0
        %v1172 = vsel %vm1156, %v1073, 0.0
        %v1173 = vsel %vm1157, %v1074, 0.0
        %v1174 = vsel %vm1158, %v1075, 0.0
        %v1175 = vsel %vm1159, %v1076, 0.0
        %v1176 = vsel %vm1160, %v1077, 0.0
        %v1177 = vsel %vm1161, %v1078, 0.0
        %v1178 = vsel %vm1162, %v1079, 0.0
        %v1179 = vsel %vm1163, %v1080, 0.0
        %v1180 = vsel %vm1164, %v1081, 0.0
        %v1181 = vsel %vm1165, %v1082, 0.0
        %v1182 = vsel %vm1166, %v1083, 0.0
        %v1183 = vsel %vm1167, %v1084, 0.0
        %v1184 = vsel %vm1168, %v1085, 0.0
        %v1185 = vsel %vm1169, %v1086, 0.0
        %v1186 = vsel %vm1170, %v1087, 0.0
        %vm1187 = vcmask 7168
        %v1188 = vsel %vm1187, %v1171, 0.0
        %v1189 = vsel %vm1187, %v1172, 0.0
        %v1190 = vadd.f32 %v1188, %v1189
        %v1191 = vsel %vm1187, %v1173, 0.0
        %v1192 = vadd.f32 %v1190, %v1191
        %v1193 = vsel %vm1187, %v1174, 0.0
        %v1194 = vadd.f32 %v1192, %v1193
        %v1195 = vsel %vm1187, %v1175, 0.0
        %v1196 = vadd.f32 %v1194, %v1195
        %v1197 = vsel %vm1187, %v1176, 0.0
        %v1198 = vadd.f32 %v1196, %v1197
        %v1199 = vsel %vm1187, %v1177, 0.0
        %v1200 = vadd.f32 %v1198, %v1199
        %v1201 = vsel %vm1187, %v1178, 0.0
        %v1202 = vadd.f32 %v1200, %v1201
        %v1203 = vsel %vm1187, %v1179, 0.0
        %v1204 = vadd.f32 %v1202, %v1203
        %v1205 = vsel %vm1187, %v1180, 0.0
        %v1206 = vadd.f32 %v1204, %v1205
        %v1207 = vsel %vm1187, %v1181, 0.0
        %v1208 = vadd.f32 %v1206, %v1207
        %v1209 = vsel %vm1187, %v1182, 0.0
        %v1210 = vadd.f32 %v1208, %v1209
        %v1211 = vsel %vm1187, %v1183, 0.0
        %v1212 = vadd.f32 %v1210, %v1211
        %v1213 = vsel %vm1187, %v1184, 0.0
        %v1214 = vadd.f32 %v1212, %v1213
        %v1215 = vsel %vm1187, %v1185, 0.0
        %v1216 = vadd.f32 %v1214, %v1215
        %v1217 = vsel %vm1187, %v1186, 0.0
        %v1218 = vadd.f32 %v1216, %v1217
        %1219 = vadd.xlane.f32.xlu0 %v1218
        %v1220 = vpop.xlane.xlu0 %1219
        %v1221 = vrot.slane %v1220, 4
        %v1222 = vadd.f32 %v1220, %v1221
        %v1223 = vrot.slane %v1222, 2
        %v1224 = vadd.f32 %v1222, %v1223
        %v1225 = vrot.slane %v1224, 1
        %v1226 = vadd.f32 %v1224, %v1225
        %s1227 = vtos %v1226
        %v1228 = vsel %vm1155, 1, 0
        %v1229 = vsel %vm1156, 1, 0
        %v1230 = vsel %vm1157, 1, 0
        %v1231 = vsel %vm1158, 1, 0
        %v1232 = vsel %vm1159, 1, 0
        %v1233 = vsel %vm1160, 1, 0
        %v1234 = vsel %vm1161, 1, 0
        %v1235 = vsel %vm1162, 1, 0
        %v1236 = vsel %vm1163, 1, 0
        %v1237 = vsel %vm1164, 1, 0
        %v1238 = vsel %vm1165, 1, 0
        %v1239 = vsel %vm1166, 1, 0
        %v1240 = vsel %vm1167, 1, 0
        %v1241 = vsel %vm1168, 1, 0
        %v1242 = vsel %vm1169, 1, 0
        %v1243 = vsel %vm1170, 1, 0
        %v1244 = vcvt.s32.f32 %v1228
        %v1245 = vcvt.s32.f32 %v1229
        %v1246 = vcvt.s32.f32 %v1230
        %v1247 = vcvt.s32.f32 %v1231
        %v1248 = vcvt.s32.f32 %v1232
        %v1249 = vcvt.s32.f32 %v1233
        %v1250 = vcvt.s32.f32 %v1234
        %v1251 = vcvt.s32.f32 %v1235
        %v1252 = vcvt.s32.f32 %v1236
        %v1253 = vcvt.s32.f32 %v1237
        %v1254 = vcvt.s32.f32 %v1238
        %v1255 = vcvt.s32.f32 %v1239
        %v1256 = vcvt.s32.f32 %v1240
        %v1257 = vcvt.s32.f32 %v1241
        %v1258 = vcvt.s32.f32 %v1242
        %v1259 = vcvt.s32.f32 %v1243
        %v1260 = vsel %vm1187, %v1244, 0.0
        %v1261 = vsel %vm1187, %v1245, 0.0
        %v1262 = vadd.f32 %v1260, %v1261
        %v1263 = vsel %vm1187, %v1246, 0.0
        %v1264 = vadd.f32 %v1262, %v1263
        %v1265 = vsel %vm1187, %v1247, 0.0
        %v1266 = vadd.f32 %v1264, %v1265
        %v1267 = vsel %vm1187, %v1248, 0.0
        %v1268 = vadd.f32 %v1266, %v1267
        %v1269 = vsel %vm1187, %v1249, 0.0
        %v1270 = vadd.f32 %v1268, %v1269
        %v1271 = vsel %vm1187, %v1250, 0.0
        %v1272 = vadd.f32 %v1270, %v1271
        %v1273 = vsel %vm1187, %v1251, 0.0
        %v1274 = vadd.f32 %v1272, %v1273
        %v1275 = vsel %vm1187, %v1252, 0.0
        %v1276 = vadd.f32 %v1274, %v1275
        %v1277 = vsel %vm1187, %v1253, 0.0
        %v1278 = vadd.f32 %v1276, %v1277
        %v1279 = vsel %vm1187, %v1254, 0.0
        %v1280 = vadd.f32 %v1278, %v1279
        %v1281 = vsel %vm1187, %v1255, 0.0
        %v1282 = vadd.f32 %v1280, %v1281
        %v1283 = vsel %vm1187, %v1256, 0.0
        %v1284 = vadd.f32 %v1282, %v1283
        %v1285 = vsel %vm1187, %v1257, 0.0
        %v1286 = vadd.f32 %v1284, %v1285
        %v1287 = vsel %vm1187, %v1258, 0.0
        %v1288 = vadd.f32 %v1286, %v1287
        %v1289 = vsel %vm1187, %v1259, 0.0
        %v1290 = vadd.f32 %v1288, %v1289
        %1291 = vadd.xlane.f32.xlu0 %v1290
        %v1292 = vpop.xlane.xlu0 %1291
        %v1293 = vrot.slane %v1292, 4
        %v1294 = vadd.f32 %v1292, %v1293
        %v1295 = vrot.slane %v1294, 2
        %v1296 = vadd.f32 %v1294, %v1295
        %v1297 = vrot.slane %v1296, 1
        %v1298 = vadd.f32 %v1296, %v1297
        %s1299 = vtos %v1298
        %vm1300 = vcmp.eq.s32.totalorder %v733, 0
        %vm1301 = vcmp.eq.s32.totalorder %v733, 1
        %v1302 = vstv %s1299
        %v1303 = vsel %vm1301, %v1302, 0.0
        %v1304 = vstv %s1227
        %v1305 = vsel %vm1300, %v1304, %v1303
        %1306 = vst [vmem:[%s264] sm:$0x1] %v1305
        %s1307 = sand.u32 %s122, 1
        %s1308 = sand.u32 %s122, 1
        %s1309 = smul.addr %s1308, 128
        %s1310 = scalar_lea.vmem [#allocation2], %s1309
        %s1311 = sand.u32 %s148, 1
        %s1312 = scalar_lea.sflag [#allocation4], %s1311
        %s1313 = sand.u32 %s148, 1
        %s1314 = scalar_lea.vmem [#allocation3], %s1313
        // Predicated region
        $region37: #{tpu_custom_call.1} parent=35 // pred_check
          %p1315 = pneg %p132
        $region38: #{tpu_custom_call.1} parent=35 // pred_check_branch
          %1317 = sbr.rel (%p1315) target = $region40
        $region39: #{tpu_custom_call.1} parent=35 // pred_region
          %s1318 = smul.u32 16, %s20
          %s1319 = ssub.s32 24, %s1318
          %p1320 = scmp.lt.s32.totalorder %s1319, 16
          %s1321 = scalar_select %p1320, %s1319, 16
          %s1322 = smul.u32 128, %s1321
          %p1323 = scmp.ne.s32.totalorder 0, %s1322
          %s1324 = smul.addr %s1318, 8
          %s1325 = scalar_lea.vmem %s4, %s1324
          // Predicated region
          $region41: #{tpu_custom_call.1} parent=39 // pred_check
            %p1326 = pneg %p1323
          $region42: #{tpu_custom_call.1} parent=39 // pred_check_branch
            %1328 = sbr.rel (%p1326) target = $region44
          $region43: #{tpu_custom_call.1} parent=39 // pred_region
            // Predicated region
            $region45: #{tpu_custom_call.1} parent=43 // pred_check
              _
            $region46: #{tpu_custom_call.1} parent=43 // pred_check_branch
              %1330 = sbr.rel (0) target = $region48
            $region47: #{tpu_custom_call.1} parent=43 // pred_region
              // Predicated region
              $region67: #{tpu_custom_call.1} parent=47 // pred_check
                _
              $region68: #{tpu_custom_call.1} parent=47 // pred_check_branch
                %1409 = sbr.rel (0) target = $region70
              $region69: #{tpu_custom_call.1} parent=47 // pred_region
                %s1410 = sshrl.u32 %s1321, 4
                // While loop
                $region71: #{tpu_custom_call.1} parent=69 // loop_pre_header
                  _
                $region72: #{tpu_custom_call.1} parent=69 // loop_header
                  %s1412 = sphi 0, %s1414
                  %p1413 = scmp.ge.s32.totalorder %s1412, %s1410
                  %s1417 = sphi 0, %s1454
                  %s1418 = sphi %s1310, %s1457
                  %s1419 = sphi %s1325, %s1458
                $region73: #{tpu_custom_call.1} parent=69 // loop_header_branch
                  %1416 = sbr.rel (%p1413) target = $region77
                $region74: #{tpu_custom_call.1} parent=69 // loop_body
                  %v1420 = vld [vmem:[%s1418] sm:$0xff]
                  %1421 = vst [vmem:[%s1419] sm:$0xff] %v1420
                  %v1422 = vld [vmem:[%s1418 + $0x8] sm:$0xff]
                  %1423 = vst [vmem:[%s1419 + $0x8] sm:$0xff] %v1422
                  %v1424 = vld [vmem:[%s1418 + $0x10] sm:$0xff]
                  %1425 = vst [vmem:[%s1419 + $0x10] sm:$0xff] %v1424
                  %v1426 = vld [vmem:[%s1418 + $0x18] sm:$0xff]
                  %1427 = vst [vmem:[%s1419 + $0x18] sm:$0xff] %v1426
                  %v1428 = vld [vmem:[%s1418 + $0x20] sm:$0xff]
                  %1429 = vst [vmem:[%s1419 + $0x20] sm:$0xff] %v1428
                  %v1430 = vld [vmem:[%s1418 + $0x28] sm:$0xff]
                  %1431 = vst [vmem:[%s1419 + $0x28] sm:$0xff] %v1430
                  %v1432 = vld [vmem:[%s1418 + $0x30] sm:$0xff]
                  %1433 = vst [vmem:[%s1419 + $0x30] sm:$0xff] %v1432
                  %v1434 = vld [vmem:[%s1418 + $0x38] sm:$0xff]
                  %1435 = vst [vmem:[%s1419 + $0x38] sm:$0xff] %v1434
                  %v1436 = vld [vmem:[%s1418 + $0x40] sm:$0xff]
                  %1437 = vst [vmem:[%s1419 + $0x40] sm:$0xff] %v1436
                  %v1438 = vld [vmem:[%s1418 + $0x48] sm:$0xff]
                  %1439 = vst [vmem:[%s1419 + $0x48] sm:$0xff] %v1438
                  %v1440 = vld [vmem:[%s1418 + $0x50] sm:$0xff]
                  %1441 = vst [vmem:[%s1419 + $0x50] sm:$0xff] %v1440
                  %v1442 = vld [vmem:[%s1418 + $0x58] sm:$0xff]
                  %1443 = vst [vmem:[%s1419 + $0x58] sm:$0xff] %v1442
                  %v1444 = vld [vmem:[%s1418 + $0x60] sm:$0xff]
                  %1445 = vst [vmem:[%s1419 + $0x60] sm:$0xff] %v1444
                  %v1446 = vld [vmem:[%s1418 + $0x68] sm:$0xff]
                  %1447 = vst [vmem:[%s1419 + $0x68] sm:$0xff] %v1446
                  %v1448 = vld [vmem:[%s1418 + $0x70] sm:$0xff]
                  %1449 = vst [vmem:[%s1419 + $0x70] sm:$0xff] %v1448
                  %v1450 = vld [vmem:[%s1418 + $0x78] sm:$0xff]
                  %1451 = vst [vmem:[%s1419 + $0x78] sm:$0xff] %v1450
                  %s1452 = sadd.s32 1, %s1417
                  %p1453 = scmp.ge.s32.totalorder %s1452, %s1410
                  %s1454 = scalar_select %p1453, 0, %s1452
                  %s1455 = smul.u32 %s1454, 128
                  %s1456 = smul.u32 %s1454, 128
                  %s1457 = scalar_lea.vmem %s1310, %s1455 [#allocation2]
                  %s1458 = scalar_lea.vmem %s1325, %s1456
                $region75: #{tpu_custom_call.1} parent=69 // loop_footer
                  %s1414 = sadd.s32 %s1412, 1
                $region76: #{tpu_custom_call.1} parent=69 // loop_footer_branch
                  %1411 = sbr.rel target = $region72
                $region77: #{tpu_custom_call.1} parent=69 // loop_exit
                  _
                %s1459 = sshrl.u32 %s1321, 4
                %s1460 = sand.u32 %s1321, 15
                %s1461 = smul.u32 %s1459, 16
                %s1462 = smul.u32 8, %s1461
                %s1463 = scalar_lea.vmem %s1310, %s1462 [#allocation2]
                %s1464 = smul.u32 8, %s1461
                %s1465 = scalar_lea.vmem %s1325, %s1464
                // While loop
                $region78: #{tpu_custom_call.1} parent=69 // loop_pre_header
                  _
                $region79: #{tpu_custom_call.1} parent=69 // loop_header
                  %s1467 = sphi 0, %s1469
                  %p1468 = scmp.ge.s32.totalorder %s1467, %s1460
                  %s1472 = sphi 0, %s1479
                  %s1473 = sphi %s1463, %s1482
                  %s1474 = sphi %s1465, %s1483
                $region80: #{tpu_custom_call.1} parent=69 // loop_header_branch
                  %1471 = sbr.rel (%p1468) target = $region84
                $region81: #{tpu_custom_call.1} parent=69 // loop_body
                  %v1475 = vld [vmem:[%s1473] sm:$0xff]
                  %1476 = vst [vmem:[%s1474] sm:$0xff] %v1475
                  %s1477 = sadd.s32 1, %s1472
                  %p1478 = scmp.ge.s32.totalorder %s1477, %s1460
                  %s1479 = scalar_select %p1478, 0, %s1477
                  %s1480 = smul.u32 %s1479, 8
                  %s1481 = smul.u32 %s1479, 8
                  %s1482 = scalar_lea.vmem %s1463, %s1480 [#allocation2]
                  %s1483 = scalar_lea.vmem %s1465, %s1481
                $region82: #{tpu_custom_call.1} parent=69 // loop_footer
                  %s1469 = sadd.s32 %s1467, 1
                $region83: #{tpu_custom_call.1} parent=69 // loop_footer_branch
                  %1466 = sbr.rel target = $region79
                $region84: #{tpu_custom_call.1} parent=69 // loop_exit
                  _
              $region70: #{tpu_custom_call.1} parent=47 // pred_fallthru
                _
              // Predicated region
              $region85: #{tpu_custom_call.1} parent=47 // pred_check
                _
              $region86: #{tpu_custom_call.1} parent=47 // pred_check_branch
                %1485 = sbr.rel target = $region88
              $region87: #{tpu_custom_call.1} parent=47 // pred_region
                _
              $region88: #{tpu_custom_call.1} parent=47 // pred_fallthru
                _
            $region48: #{tpu_custom_call.1} parent=43 // pred_fallthru
              _
            // Predicated region
            $region49: #{tpu_custom_call.1} parent=43 // pred_check
              _
            $region50: #{tpu_custom_call.1} parent=43 // pred_check_branch
              %1332 = sbr.rel target = $region52
            $region51: #{tpu_custom_call.1} parent=43 // pred_region
              %s1334 = sshrl.u32 %s1321, 4
              // While loop
              $region53: #{tpu_custom_call.1} parent=51 // loop_pre_header
                _
              $region54: #{tpu_custom_call.1} parent=51 // loop_header
                %s1336 = sphi 0, %s1338
                %p1337 = scmp.ge.s32.totalorder %s1336, %s1334
                %s1341 = sphi 0, %s1378
                %s1342 = sphi %s1310, %s1381
                %s1343 = sphi %s1325, %s1382
              $region55: #{tpu_custom_call.1} parent=51 // loop_header_branch
                %1340 = sbr.rel (%p1337) target = $region59
              $region56: #{tpu_custom_call.1} parent=51 // loop_body
                %v1344 = vld [vmem:[%s1342] sm:$0xff]
                %1345 = vst [vmem:[%s1343] sm:$0xff] %v1344
                %v1346 = vld [vmem:[%s1342 + $0x8] sm:$0xff]
                %1347 = vst [vmem:[%s1343 + $0x8] sm:$0xff] %v1346
                %v1348 = vld [vmem:[%s1342 + $0x10] sm:$0xff]
                %1349 = vst [vmem:[%s1343 + $0x10] sm:$0xff] %v1348
                %v1350 = vld [vmem:[%s1342 + $0x18] sm:$0xff]
                %1351 = vst [vmem:[%s1343 + $0x18] sm:$0xff] %v1350
                %v1352 = vld [vmem:[%s1342 + $0x20] sm:$0xff]
                %1353 = vst [vmem:[%s1343 + $0x20] sm:$0xff] %v1352
                %v1354 = vld [vmem:[%s1342 + $0x28] sm:$0xff]
                %1355 = vst [vmem:[%s1343 + $0x28] sm:$0xff] %v1354
                %v1356 = vld [vmem:[%s1342 + $0x30] sm:$0xff]
                %1357 = vst [vmem:[%s1343 + $0x30] sm:$0xff] %v1356
                %v1358 = vld [vmem:[%s1342 + $0x38] sm:$0xff]
                %1359 = vst [vmem:[%s1343 + $0x38] sm:$0xff] %v1358
                %v1360 = vld [vmem:[%s1342 + $0x40] sm:$0xff]
                %1361 = vst [vmem:[%s1343 + $0x40] sm:$0xff] %v1360
                %v1362 = vld [vmem:[%s1342 + $0x48] sm:$0xff]
                %1363 = vst [vmem:[%s1343 + $0x48] sm:$0xff] %v1362
                %v1364 = vld [vmem:[%s1342 + $0x50] sm:$0xff]
                %1365 = vst [vmem:[%s1343 + $0x50] sm:$0xff] %v1364
                %v1366 = vld [vmem:[%s1342 + $0x58] sm:$0xff]
                %1367 = vst [vmem:[%s1343 + $0x58] sm:$0xff] %v1366
                %v1368 = vld [vmem:[%s1342 + $0x60] sm:$0xff]
                %1369 = vst [vmem:[%s1343 + $0x60] sm:$0xff] %v1368
                %v1370 = vld [vmem:[%s1342 + $0x68] sm:$0xff]
                %1371 = vst [vmem:[%s1343 + $0x68] sm:$0xff] %v1370
                %v1372 = vld [vmem:[%s1342 + $0x70] sm:$0xff]
                %1373 = vst [vmem:[%s1343 + $0x70] sm:$0xff] %v1372
                %v1374 = vld [vmem:[%s1342 + $0x78] sm:$0xff]
                %1375 = vst [vmem:[%s1343 + $0x78] sm:$0xff] %v1374
                %s1376 = sadd.s32 1, %s1341
                %p1377 = scmp.ge.s32.totalorder %s1376, %s1334
                %s1378 = scalar_select %p1377, 0, %s1376
                %s1379 = smul.u32 %s1378, 128
                %s1380 = smul.u32 %s1378, 128
                %s1381 = scalar_lea.vmem %s1310, %s1379 [#allocation2]
                %s1382 = scalar_lea.vmem %s1325, %s1380
              $region57: #{tpu_custom_call.1} parent=51 // loop_footer
                %s1338 = sadd.s32 %s1336, 1
              $region58: #{tpu_custom_call.1} parent=51 // loop_footer_branch
                %1335 = sbr.rel target = $region54
              $region59: #{tpu_custom_call.1} parent=51 // loop_exit
                _
              %s1383 = sshrl.u32 %s1321, 4
              %s1384 = sand.u32 %s1321, 15
              %s1385 = smul.u32 %s1383, 16
              %s1386 = smul.u32 8, %s1385
              %s1387 = scalar_lea.vmem %s1310, %s1386 [#allocation2]
              %s1388 = smul.u32 8, %s1385
              %s1389 = scalar_lea.vmem %s1325, %s1388
              // While loop
              $region60: #{tpu_custom_call.1} parent=51 // loop_pre_header
                _
              $region61: #{tpu_custom_call.1} parent=51 // loop_header
                %s1391 = sphi 0, %s1393
                %p1392 = scmp.ge.s32.totalorder %s1391, %s1384
                %s1396 = sphi 0, %s1403
                %s1397 = sphi %s1387, %s1406
                %s1398 = sphi %s1389, %s1407
              $region62: #{tpu_custom_call.1} parent=51 // loop_header_branch
                %1395 = sbr.rel (%p1392) target = $region66
              $region63: #{tpu_custom_call.1} parent=51 // loop_body
                %v1399 = vld [vmem:[%s1397] sm:$0xff]
                %1400 = vst [vmem:[%s1398] sm:$0xff] %v1399
                %s1401 = sadd.s32 1, %s1396
                %p1402 = scmp.ge.s32.totalorder %s1401, %s1384
                %s1403 = scalar_select %p1402, 0, %s1401
                %s1404 = smul.u32 %s1403, 8
                %s1405 = smul.u32 %s1403, 8
                %s1406 = scalar_lea.vmem %s1387, %s1404 [#allocation2]
                %s1407 = scalar_lea.vmem %s1389, %s1405
              $region64: #{tpu_custom_call.1} parent=51 // loop_footer
                %s1393 = sadd.s32 %s1391, 1
              $region65: #{tpu_custom_call.1} parent=51 // loop_footer_branch
                %1390 = sbr.rel target = $region61
              $region66: #{tpu_custom_call.1} parent=51 // loop_exit
                _
            $region52: #{tpu_custom_call.1} parent=43 // pred_fallthru
              _
          $region44: #{tpu_custom_call.1} parent=39 // pred_fallthru
            _
          %1486 = vnop
        $region40: #{tpu_custom_call.1} parent=35 // pred_fallthru
          _
        // Predicated region
        $region89: #{tpu_custom_call.1} parent=35 // pred_check
          %p1487 = pneg %p158
        $region90: #{tpu_custom_call.1} parent=35 // pred_check_branch
          %1489 = sbr.rel (%p1487) target = $region92
        $region91: #{tpu_custom_call.1} parent=35 // pred_region
          %s1491 = ssub.s32 16, 16
          %1492 = vsyncadd %s1312, %s1491
          %s1493 = smul.addr %s20, 16
          %s1494 = scalar_lea.hbm %s5, %s1493
          %s1496 = sshll.u32 %s1314, 4
          %s1497 = int_to_ptr.vmem [resolvable:$true] %s1496
          %1499 = dma.vmem_to_hbm [thread:$0]  %s1497, 16, %s1494, %s1312
        $region92: #{tpu_custom_call.1} parent=35 // pred_fallthru
          _
      $region36: #{tpu_custom_call.1} parent=5 // pred_fallthru
        _
      %p1500 = scmp.le.s32.totalorder 2, %s15
      // Predicated region
      $region93: #{tpu_custom_call.1} parent=5 // pred_check
        %p1501 = pneg %p1500
      $region94: #{tpu_custom_call.1} parent=5 // pred_check_branch
        %1503 = sbr.rel (%p1501) target = $region96
      $region95: #{tpu_custom_call.1} parent=5 // pred_region
        %s1504 = ssub.s32 %s15, 2
        // Predicated region
        $region97: #{tpu_custom_call.1} parent=95 // pred_check
          %p1505 = pneg %p138
        $region98: #{tpu_custom_call.1} parent=95 // pred_check_branch
          %1507 = sbr.rel (%p1505) target = $region100
        $region99: #{tpu_custom_call.1} parent=95 // pred_region
          %s1508 = sand.u32 %s123, 1
          %s1509 = sand.u32 %s123, 1
          %s1510 = smul.addr %s1509, 128
          %s1511 = scalar_lea.vmem [#allocation2], %s1510
        $region100: #{tpu_custom_call.1} parent=95 // pred_fallthru
          _
        // Predicated region
        $region101: #{tpu_custom_call.1} parent=95 // pred_check
          %p1512 = pneg %p164
        $region102: #{tpu_custom_call.1} parent=95 // pred_check_branch
          %1514 = sbr.rel (%p1512) target = $region104
        $region103: #{tpu_custom_call.1} parent=95 // pred_region
          %s1515 = sand.u32 %s149, 1
          %s1516 = scalar_lea.sflag [#allocation4], %s1515
          %s1517 = sand.u32 %s149, 1
          %s1518 = scalar_lea.vmem [#allocation3], %s1517
          %1519 = dma.done %s1516, 16
        $region104: #{tpu_custom_call.1} parent=95 // pred_fallthru
          _
      $region96: #{tpu_custom_call.1} parent=5 // pred_fallthru
        _
    $region6: #{tpu_custom_call.1} parent=1 // loop_footer
      %s19 = sadd.s32 1, %s15
    $region7: #{tpu_custom_call.1} parent=1 // loop_footer_branch
      %14 = sbr.rel target = $region3
    $region8: #{tpu_custom_call.1} parent=1 // loop_exit
      _
    %1520 = vsyncpa [#allocation4], 1
    %s1521 = scalar_lea.sflag [#allocation4], 1
    %1522 = vsyncpa %s1521, 1

</llo_original>
